<compile_context>
chip_gen: v7x
topology: tpu7x:2x2x1
jax: 0.10.0
libtpu: 0.0.40
codegen_flags: <defaults>
</compile_context>

<pallas_src>
import jax
import jax.numpy as jnp
from jax import lax
from jax.experimental import pallas as pl
from jax.experimental.pallas import tpu as pltpu

_SQRT_2_OVER_PI = 0.7978845608028654


def _gelu_tanh(x):
    # GPT-J "NewGELU" == gelu(approximate='tanh').
    return 0.5 * x * (1.0 + jnp.tanh(_SQRT_2_OVER_PI * (x + 0.044715 * (x * x * x))))


def _make_kernel(use_scratch):
    def kernel(x_ref, w1_ref, b1_ref, w2_ref, b2_ref, o_ref, *scratch):
        # x_ref  : [bm, d_in]          bf16 batch tile (resident across ff axis)
        # w1_ref : [bf, d_in]          bf16 fc_in weight slice, PyTorch (out, in) layout
        # b1_ref : [n_ff, bf]   f32    fc_in bias, fully resident; row j = slice for step j
        # w2_ref : [bf, d_out]         bf16 fc_out weight slice, pre-transposed [K, N]
        # b2_ref : [1, d_out]   f32    fc_out bias
        # o_ref  : [bm, d_out]         output tile (resident across ff axis)
        # scratch: optional f32 accumulator (only for non-f32 outputs)
        acc_ref = scratch[0] if use_scratch else o_ref
        j = pl.program_id(1)

        @pl.when(j == 0)
        def _():
            acc_ref[...] = jnp.zeros_like(acc_ref)

        # fc_in slice: h = x @ W1[j]^T + b1[j]  (contract lane axes -> no transpose op)
        h = lax.dot_general(
            x_ref[...], w1_ref[...],
            dimension_numbers=(((1,), (1,)), ((), ())),
            preferred_element_type=jnp.float32,
        )
        h = h + b1_ref[pl.ds(j, 1), :]          # resident bias row, no per-step DMA

        # tanh-GELU between the two linears (f32).
        g = _gelu_tanh(h)

        # fc_out partial sum over this ff slice: acc += g @ W2t[j]   ([M,K] x [K,N])
        acc_ref[...] += lax.dot_general(
            g.astype(w2_ref.dtype), w2_ref[...],
            dimension_numbers=(((1,), (0,)), ((), ())),
            preferred_element_type=jnp.float32,
        )

        @pl.when(j == pl.num_programs(1) - 1)
        def _():
            # Dropout is identity at inference.
            o_ref[...] = (acc_ref[...] + b2_ref[...]).astype(o_ref.dtype)

    return kernel


def _pick_block_m(m, target):
    """Largest divisor of m that is <= target and 8-row aligned (or == m);
    if that leaves a single batch tile, split in two so v7x megacore has work."""
    target = min(target, m)
    best = m
    for d in range(target, 0, -1):
        if m % d == 0 and (d % 8 == 0 or d == m):
            best = d
            break
    if best == m and m >= 16 and (m // 2) % 8 == 0:
        best = m // 2
    return best


def _pick_block_ff(d_ff, target):
    """Largest 128-multiple <= target that divides d_ff (fallback: full d_ff)."""
    d = (min(target, d_ff) // 128) * 128
    while d >= 128:
        if d_ff % d == 0:
            return d
        d -= 128
    return d_ff


def prepare_gptj_mlp_params(w_in, b_in, w_out, b_out, *, compute_dtype=jnp.bfloat16):
    """One-time weight prep: bf16 cast + fc_out transpose to [d_ff, d_model].

    Call once at model init (or under jit, where it constant-folds); the kernel
    then consumes contiguous row-slab weight blocks with no per-call transposes.
    """
    return dict(
        w_in=w_in.astype(compute_dtype),            # [d_ff, d_model]  (out, in)
        b_in=b_in.astype(jnp.float32),              # [d_ff]
        w_out_t=w_out.T.astype(compute_dtype),      # [d_ff, d_model]  (K, N)
        b_out=b_out.astype(jnp.float32),            # [d_model]
    )


def gptj_mlp_prepared(x, params, *, block_m=512, block_ff=512,
                      compute_dtype=jnp.bfloat16):
    orig_shape = x.shape
    d_in = orig_shape[-1]
    x2 = x.reshape(-1, d_in)
    m = x2.shape[0]

    w_in, b_in = params["w_in"], params["b_in"]
    w_out_t, b_out = params["w_out_t"], params["b_out"]
    d_ff = w_in.shape[0]
    d_out = w_out_t.shape[1]

    assert d_in % 128 == 0 and d_out % 128 == 0, "model dims must be 128-multiples"
    block_m = _pick_block_m(m, block_m)
    block_ff = _pick_block_ff(d_ff, block_ff)
    n_m = m // block_m
    n_ff = d_ff // block_ff

    out_dtype = x.dtype
    use_scratch = out_dtype != jnp.float32  # f32 outputs accumulate in-place in o_ref

    x2c = x2.astype(compute_dtype)
    b_in_tiles = b_in.reshape(n_ff, block_ff)   # resident bias table, row j per ff step
    b_out_2d = b_out.reshape(1, d_out)

    isz = jnp.dtype(compute_dtype).itemsize
    osz = jnp.dtype(out_dtype).itemsize

    cost = pl.CostEstimate(
        flops=2 * m * d_in * d_ff + 2 * m * d_ff * d_out,
        transcendentals=m * d_ff,  # one tanh per hidden activation
        # Weights are re-streamed from HBM once per batch tile.
        bytes_accessed=(m * d_in * isz + m * d_out * osz
                        + n_m * (d_ff * d_in + d_ff * d_out) * isz
                        + 4 * (d_ff + d_out)),
    )

    # VMEM budget: double-buffered inputs/outputs + optional f32 accumulator.
    vmem_est = (2 * block_m * d_in * isz          # x tile
                + 2 * block_ff * d_in * isz       # fc_in weight slice
                + 2 * block_ff * d_out * isz      # fc_out weight slice
                + 2 * (n_ff * block_ff + d_out) * 4   # biases
                + 2 * block_m * d_out * osz       # output tile
                + (block_m * d_out * 4 if use_scratch else 0))
    vmem_limit = int(min(120 << 20, max(32 << 20, vmem_est + (4 << 20))))

    kernel = _make_kernel(use_scratch)
    scratch = [pltpu.VMEM((block_m, d_out), jnp.float32)] if use_scratch else []

    out2 = pl.pallas_call(
        kernel,
        out_shape=jax.ShapeDtypeStruct((m, d_out), out_dtype),
        grid=(n_m, n_ff),
        in_specs=[
            pl.BlockSpec((block_m, d_in), lambda i, j: (i, 0)),    # x tile
            pl.BlockSpec((block_ff, d_in), lambda i, j: (j, 0)),   # fc_in weight slice
            pl.BlockSpec((n_ff, block_ff), lambda i, j: (0, 0)),   # fc_in bias (resident)
            pl.BlockSpec((block_ff, d_out), lambda i, j: (j, 0)),  # fc_out weight slab [K,N]
            pl.BlockSpec((1, d_out), lambda i, j: (0, 0)),         # fc_out bias
        ],
        out_specs=pl.BlockSpec((block_m, d_out), lambda i, j: (i, 0)),
        scratch_shapes=scratch,
        compiler_params=pltpu.CompilerParams(
            dimension_semantics=("parallel", "arbitrary"),
            vmem_limit_bytes=vmem_limit),
        cost_estimate=cost,
    )(x2c, w_in, b_in_tiles, w_out_t, b_out_2d)

    return out2.reshape(*orig_shape[:-1], d_out)


def gptj_mlp(x, w_in, b_in, w_out, b_out, *, block_m=512, block_ff=512,
             compute_dtype=jnp.bfloat16):
    """Convenience wrapper taking PyTorch-layout weights directly."""
    params = prepare_gptj_mlp_params(w_in, b_in, w_out, b_out,
                                     compute_dtype=compute_dtype)
    return gptj_mlp_prepared(x, params, block_m=block_m, block_ff=block_ff,
                             compute_dtype=compute_dtype)


def _reference_quantized(x, w_in, b_in, w_out, b_out):
    """Exact-semantics reference: bf16-rounded operands, f32 accumulation
    (this is what the MXU computes)."""
    q = lambda a: a.astype(jnp.bfloat16).astype(jnp.float32)
    h = jnp.dot(q(x), q(w_in).T, precision=lax.Precision.HIGHEST) + b_in
    g = q(_gelu_tanh(h))
    return jnp.dot(g, q(w_out).T, precision=lax.Precision.HIGHEST) + b_out


def _reference_f32(x, w_in, b_in, w_out, b_out):
    h = jnp.dot(x, w_in.T, precision=lax.Precision.HIGHEST) + b_in
    g = _gelu_tanh(h)
    return jnp.dot(g, w_out.T, precision=lax.Precision.HIGHEST) + b_out


if __name__ == "__main__":
    key = jax.random.PRNGKey(0)
    kx, kw1, kb1, kw2, kb2 = jax.random.split(key, 5)

    # Scaled-down GPT-J MLP (real module: d_model=4096, d_ff=16384) -- same 1:4
    # ratio, all dims multiples of 128 so the kernel tiling logic is identical.
    B, S = 2, 128
    D_MODEL, D_FF = 256, 1024

    x = jax.random.normal(kx, (B, S, D_MODEL), dtype=jnp.float32)
    w_in = jax.random.normal(kw1, (D_FF, D_MODEL), dtype=jnp.float32) * 0.05
    b_in = jax.random.normal(kb1, (D_FF,), dtype=jnp.float32) * 0.05
    w_out = jax.random.normal(kw2, (D_MODEL, D_FF), dtype=jnp.float32) * 0.05
    b_out = jax.random.normal(kb2, (D_MODEL,), dtype=jnp.float32) * 0.05

    # One-time prep (bf16 cast + fc_out transpose), then the fused kernel.
    params = prepare_gptj_mlp_params(w_in, b_in, w_out, b_out)
    out = gptj_mlp_prepared(x, params)
    out = jax.block_until_ready(out)
    assert out.shape == (B, S, D_MODEL), out.shape

    # Primary check: matches the bf16-operand / f32-accumulation semantics.
    ref_q = _reference_quantized(x, w_in, b_in, w_out, b_out)
    err_q = float(jnp.max(jnp.abs(out - ref_q)))
    assert jnp.allclose(out, ref_q, atol=5e-3, rtol=5e-3), \
        f"mismatch vs bf16-semantics reference, max abs err={err_q}"

    # Sanity check: close to the pure-f32 PyTorch-equivalent reference.
    ref_f32 = _reference_f32(x, w_in, b_in, w_out, b_out)
    err_f32 = float(jnp.max(jnp.abs(out - ref_f32)))
    assert err_f32 < 1e-1, f"bf16 path drifted too far from f32 reference: {err_f32}"

    print("KERNEL_OK")
</pallas_src>

<mosaic_0001>
module attributes {stable_mosaic.version = 11 : i64} {
  func.func @kernel(%arg0: i32, %arg1: i32, %arg2: memref<128x256xbf16, #tpu.memory_space<vmem>>, %arg3: memref<512x256xbf16, #tpu.memory_space<vmem>>, %arg4: memref<2x512xf32, #tpu.memory_space<vmem>>, %arg5: memref<512x256xbf16, #tpu.memory_space<vmem>>, %arg6: memref<1x256xf32, #tpu.memory_space<vmem>>, %arg7: memref<128x256xf32, #tpu.memory_space<vmem>>) attributes {dimension_semantics = [#tpu.dimension_semantics<parallel>, #tpu.dimension_semantics<arbitrary>], iteration_bounds = array<i64: 2, 2>, scalar_prefetch = 0 : i64, scratch_operands = 0 : i64, tpu.core_type = #tpu.core_type<tc>, window_params = [{transform_indices = @transform_0, window_bounds = array<i64: 128, 256>}, {transform_indices = @transform_1, window_bounds = array<i64: 512, 256>}, {pipeline_mode = #tpu.pipeline_mode<synchronous>, transform_indices = @transform_2, window_bounds = array<i64: 2, 512>}, {transform_indices = @transform_3, window_bounds = array<i64: 512, 256>}, {pipeline_mode = #tpu.pipeline_mode<synchronous>, transform_indices = @transform_4, window_bounds = array<i64: 1, 256>}, {transform_indices = @transform_5, window_bounds = array<i64: 128, 256>}]} {
    %c0_i32 = arith.constant 0 : i32
    %0 = arith.cmpi eq, %arg1, %c0_i32 : i32
    %1 = arith.extui %0 : i1 to i32
    %c0_i32_0 = arith.constant 0 : i32
    %2 = arith.cmpi ne, %1, %c0_i32_0 : i32
    scf.if %2 {
      %cst_17 = arith.constant 0.000000e+00 : f32
      %32 = vector.broadcast %cst_17 : f32 to vector<128x256xf32>
      %c0_18 = arith.constant 0 : index
      %c0_19 = arith.constant 0 : index
      %33 = vector.load %arg7[%c0_18, %c0_19] : memref<128x256xf32, #tpu.memory_space<vmem>>, vector<128x256xf32>
      tpu.vector_store %arg7[%c0_18, %c0_19], %32 {strides = array<i32>} : memref<128x256xf32, #tpu.memory_space<vmem>>, vector<128x256xf32>,
    } else {
    }
    %c0 = arith.constant 0 : index
    %c0_1 = arith.constant 0 : index
    %3 = vector.load %arg2[%c0, %c0_1] : memref<128x256xbf16, #tpu.memory_space<vmem>>, vector<128x256xbf16>
    %c0_2 = arith.constant 0 : index
    %c0_3 = arith.constant 0 : index
    %4 = vector.load %arg3[%c0_2, %c0_3] : memref<512x256xbf16, #tpu.memory_space<vmem>>, vector<512x256xbf16>
    %cst = arith.constant dense<0.000000e+00> : vector<128x512xf32>
    %5 = tpu.matmul %3, %4, %cst {dimension_numbers = #tpu.dot_dimension_numbers<[1], [1], [0], [0], [0, 0, 1, 0], [], []>} : vector<128x256xbf16>, vector<512x256xbf16>, vector<128x512xf32> -> vector<128x512xf32>
    %6 = arith.index_cast %arg1 : i32 to index
    %c0_4 = arith.constant 0 : index
    %7 = vector.load %arg4[%6, %c0_4] : memref<2x512xf32, #tpu.memory_space<vmem>>, vector<1x512xf32>
    %8 = vector.broadcast %7 : vector<1x512xf32> to vector<128x512xf32>
    %9 = arith.addf %5, %8 : vector<128x512xf32>
    %cst_5 = arith.constant 5.000000e-01 : f32
    %10 = vector.broadcast %cst_5 : f32 to vector<128x512xf32>
    %11 = arith.mulf %10, %9 : vector<128x512xf32>
    %12 = arith.mulf %9, %9 : vector<128x512xf32>
    %13 = arith.mulf %12, %9 : vector<128x512xf32>
    %cst_6 = arith.constant 4.471500e-02 : f32
    %14 = vector.broadcast %cst_6 : f32 to vector<128x512xf32>
    %15 = arith.mulf %14, %13 : vector<128x512xf32>
    %16 = arith.addf %9, %15 : vector<128x512xf32>
    %cst_7 = arith.constant 0.797884583 : f32
    %17 = vector.broadcast %cst_7 : f32 to vector<128x512xf32>
    %18 = arith.mulf %17, %16 : vector<128x512xf32>
    %19 = math.tanh %18 : vector<128x512xf32>
    %cst_8 = arith.constant 1.000000e+00 : f32
    %20 = vector.broadcast %cst_8 : f32 to vector<128x512xf32>
    %21 = arith.addf %20, %19 : vector<128x512xf32>
    %22 = arith.mulf %11, %21 : vector<128x512xf32>
    %c0_9 = arith.constant 0 : index
    %c0_10 = arith.constant 0 : index
    %23 = vector.load %arg7[%c0_9, %c0_10] : memref<128x256xf32, #tpu.memory_space<vmem>>, vector<128x256xf32>
    %24 = arith.truncf %22 : vector<128x512xf32> to vector<128x512xbf16>
    %c0_11 = arith.constant 0 : index
    %c0_12 = arith.constant 0 : index
    %25 = vector.load %arg5[%c0_11, %c0_12] : memref<512x256xbf16, #tpu.memory_space<vmem>>, vector<512x256xbf16>
    %cst_13 = arith.constant dense<0.000000e+00> : vector<128x256xf32>
    %26 = tpu.matmul %24, %25, %cst_13 {dimension_numbers = #tpu.dot_dimension_numbers<[1], [0], [0], [1], [0, 0, 1, 1], [], []>} : vector<128x512xbf16>, vector<512x256xbf16>, vector<128x256xf32> -> vector<128x256xf32>
    %27 = arith.addf %23, %26 : vector<128x256xf32>
    %c0_14 = arith.constant 0 : index
    %c0_15 = arith.constant 0 : index
    %28 = vector.load %arg7[%c0_14, %c0_15] : memref<128x256xf32, #tpu.memory_space<vmem>>, vector<128x256xf32>
    tpu.vector_store %arg7[%c0_14, %c0_15], %27 {strides = array<i32>} : memref<128x256xf32, #tpu.memory_space<vmem>>, vector<128x256xf32>,
    %c1_i32 = arith.constant 1 : i32
    %29 = arith.cmpi eq, %arg1, %c1_i32 : i32
    %30 = arith.extui %29 : i1 to i32
    %c0_i32_16 = arith.constant 0 : i32
    %31 = arith.cmpi ne, %30, %c0_i32_16 : i32
    scf.if %31 {
      %c0_17 = arith.constant 0 : index
      %c0_18 = arith.constant 0 : index
      %32 = vector.load %arg7[%c0_17, %c0_18] : memref<128x256xf32, #tpu.memory_space<vmem>>, vector<128x256xf32>
      %c0_19 = arith.constant 0 : index
      %c0_20 = arith.constant 0 : index
      %33 = vector.load %arg6[%c0_19, %c0_20] : memref<1x256xf32, #tpu.memory_space<vmem>>, vector<1x256xf32>
      %34 = vector.broadcast %33 : vector<1x256xf32> to vector<128x256xf32>
      %35 = arith.addf %32, %34 : vector<128x256xf32>
      %c0_21 = arith.constant 0 : index
      %c0_22 = arith.constant 0 : index
      %36 = vector.load %arg7[%c0_21, %c0_22] : memref<128x256xf32, #tpu.memory_space<vmem>>, vector<128x256xf32>
      tpu.vector_store %arg7[%c0_21, %c0_22], %35 {strides = array<i32>} : memref<128x256xf32, #tpu.memory_space<vmem>>, vector<128x256xf32>,
    } else {
    }
    return
  }
  func.func @transform_0(%arg0: i32, %arg1: i32) -> (i32, i32) {
    %c0_i32 = arith.constant 0 : i32
    %c0_i32_0 = arith.constant 0 : i32
    return %arg0, %c0_i32 : i32, i32
  }
  func.func @transform_1(%arg0: i32, %arg1: i32) -> (i32, i32) {
    %c0_i32 = arith.constant 0 : i32
    %c0_i32_0 = arith.constant 0 : i32
    return %arg1, %c0_i32 : i32, i32
  }
  func.func @transform_2(%arg0: i32, %arg1: i32) -> (i32, i32) {
    %c0_i32 = arith.constant 0 : i32
    %c0_i32_0 = arith.constant 0 : i32
    %c0_i32_1 = arith.constant 0 : i32
    return %c0_i32, %c0_i32_0 : i32, i32
  }
  func.func @transform_3(%arg0: i32, %arg1: i32) -> (i32, i32) {
    %c0_i32 = arith.constant 0 : i32
    %c0_i32_0 = arith.constant 0 : i32
    return %arg1, %c0_i32 : i32, i32
  }
  func.func @transform_4(%arg0: i32, %arg1: i32) -> (i32, i32) {
    %c0_i32 = arith.constant 0 : i32
    %c0_i32_0 = arith.constant 0 : i32
    %c0_i32_1 = arith.constant 0 : i32
    return %c0_i32, %c0_i32_0 : i32, i32
  }
  func.func @transform_5(%arg0: i32, %arg1: i32) -> (i32, i32) {
    %c0_i32 = arith.constant 0 : i32
    %c0_i32_0 = arith.constant 0 : i32
    return %arg0, %c0_i32 : i32, i32
  }
}

</mosaic_0001>

<llo_original>
// kernel: tpu_custom_call.1
$region0: #{tpu_custom_call.1}
  #allocation0 [shape = 'u32[]', space=smem, size = 0x4, offset = 0x4, fixed_abs, tag = 'smem constant byte address 0x4 - core index']
  #allocation1 [shape = 'u32[144,128]{1,0:T(1,128)}', space=vmem, size = 0x12000, scoped, tag = 'internal scratch']
  %s0 = inlined_call_operand.hbm [shape: bf16[256,256], index: 0, kind: input, shape index: {}]
  %s1 = inlined_call_operand.hbm [shape: bf16[1024,256], index: 1, kind: input, shape index: {}]
  %s2 = inlined_call_operand.hbm [shape: f32[2,512], index: 2, kind: input, shape index: {}]
  %s3 = inlined_call_operand.hbm [shape: bf16[1024,256], index: 3, kind: input, shape index: {}]
  %s4 = inlined_call_operand.vmem [shape: f32[1,256], index: 4, kind: input, shape index: {}]
  %s5 = inlined_call_operand.hbm [shape: f32[256,256], index: 5, kind: output, shape index: {}]
  %s6 = sld [smem:[#allocation0]]
  $region77: #{tpu_custom_call.1} parent=0
    _
  %s8 = ssub.s32 1, %s6
  %s9 = scalar_select 0, %s8, %s6
  $region1: #{tpu_custom_call.1} parent=0
    #allocation2 [shape = 'u8[131072]{0}', space=vmem, size = 0x20000, scoped, tag = 'input window, operand 0']
    #allocation3 [shape = 's32[2]{0}', space=sflag, size = 0x8, scoped, tag = 'scoped memory for tpu_custom_call.1']
    #allocation4 [shape = 's32[2]{0}', space=sflag, size = 0x8, scoped, tag = 'scoped memory for tpu_custom_call.1']
    #allocation5 [shape = 'u8[524288]{0}', space=vmem, size = 0x80000, scoped, tag = 'input window, operand 1']
    #allocation6 [shape = 's32[2]{0}', space=sflag, size = 0x8, scoped, tag = 'scoped memory for tpu_custom_call.1']
    #allocation7 [shape = 'u8[4096]{0}', space=vmem, size = 0x1000, scoped, tag = 'input window, operand 2, single buffered']
    #allocation8 [shape = 'u8[524288]{0}', space=vmem, size = 0x80000, scoped, tag = 'input window, operand 3']
    #allocation9 [shape = 's32[2]{0}', space=sflag, size = 0x8, scoped, tag = 'scoped memory for tpu_custom_call.1']
    #allocation10 [shape = 'u8[262144]{0}', space=vmem, size = 0x40000, scoped, tag = 'output window, operand 0']
    %10 = vsyncpa [#allocation3], 0
    %s11 = scalar_lea.sflag [#allocation3], 1
    %12 = vsyncpa %s11, 0
    %13 = vsyncpa [#allocation6], 0
    %s14 = scalar_lea.sflag [#allocation6], 1
    %15 = vsyncpa %s14, 0
    %16 = vsyncpa [#allocation9], 0
    %s17 = scalar_lea.sflag [#allocation9], 1
    %18 = vsyncpa %s17, 0
    %19 = vsyncpa [#allocation4], 0
    %s20 = scalar_lea.sflag [#allocation4], 1
    %21 = vsyncpa %s20, 0
    loop: start=0, step=1, limit=6
    $region2: #{tpu_custom_call.1} parent=1 // loop_pre_header
      _
    $region3: #{tpu_custom_call.1} parent=1 // loop_header
      %s23 = sphi 0, %s27
      %p24 = scmp.ge.s32.totalorder %s23, 6
      %s30 = sphi 0, %s42
      %s31 = sphi 0, %s38
      %s32 = sphi 0, %s30
      %s33 = sphi 0, %s31
      %s34 = sphi 0, %s32
      %s35 = sphi 0, %s33
      %s45 = sphi 0, %s47
      %s48 = sphi 0, %s45
      %s49 = sphi 0, %s48
      %s65 = sphi 0, %s49
      %s71 = sphi 0, %s73
      %s74 = sphi 0, %s71
      %s75 = sphi 0, %s74
      %s91 = sphi 0, %s75
      %s95 = sphi 0, %s95
      %s97 = sphi 0, %s95
      %s98 = sphi 0, %s97
      %s112 = sphi 0, %s98
      %s118 = sphi 0, %s120
      %s121 = sphi 0, %s118
      %s122 = sphi 0, %s121
      %s138 = sphi 0, %s122
      %s142 = sphi 0, %s142
      %s144 = sphi 0, %s142
      %s145 = sphi 0, %s144
      %s159 = sphi 0, %s145
      %s165 = sphi 0, %s167
      %s168 = sphi 0, %s165
      %s169 = sphi 0, %s168
      %s185 = sphi 0, %s169
    $region4: #{tpu_custom_call.1} parent=1 // loop_header_branch
      %26 = sbr.rel (%p24) target = $region8
    $region5: #{tpu_custom_call.1} parent=1 // loop_body
      %s28 = ssub.s32 %s23, 1
      %s29 = ssub.s32 %s23, 2
      %s36 = sadd.s32 1, %s31
      %p37 = scmp.ge.s32.totalorder %s36, 2
      %s38 = scalar_select %p37, 0, %s36
      %s39 = sadd.s32 1, %s30
      %s40 = scalar_select %p37, %s39, %s30
      %p41 = scmp.ge.s32.totalorder %s40, 2
      %s42 = scalar_select %p41, 0, %s40
      %s43 = ssub.s32 %s30, %s42
      %p44 = scmp.eq.s32.totalorder %s43, 0
      %s46 = sadd.s32 %s45, 1
      %s47 = scalar_select %p44, %s45, %s46
      %p50 = pneg %p44
      %p51 = scmp.eq.s32.totalorder %s23, 3
      %p52 = por %p50, %p51
      %p53 = scmp.ne.s32.totalorder %s45, %s48
      %p54 = scmp.eq.s32.totalorder %s23, 0
      %p55 = por %p53, %p54
      %p56 = scmp.ne.s32.totalorder %s45, %s48
      %p57 = scmp.eq.s32.totalorder %s28, 3
      %p58 = por %p56, %p57
      %p59 = scmp.ne.s32.totalorder %s48, %s49
      %p60 = scmp.eq.s32.totalorder %s28, 0
      %p61 = por %p59, %p60
      %p62 = scmp.ne.s32.totalorder %s48, %s49
      %p63 = scmp.eq.s32.totalorder %s29, 3
      %p64 = por %p62, %p63
      %p66 = scmp.ne.s32.totalorder %s49, %s65
      %p67 = scmp.eq.s32.totalorder %s29, 0
      %p68 = por %p66, %p67
      %s69 = ssub.s32 %s31, %s38
      %p70 = scmp.eq.s32.totalorder %s69, 0
      %s72 = sadd.s32 %s71, 1
      %s73 = scalar_select %p70, %s71, %s72
      %p76 = pneg %p70
      %p77 = scmp.eq.s32.totalorder %s23, 3
      %p78 = por %p76, %p77
      %p79 = scmp.ne.s32.totalorder %s71, %s74
      %p80 = scmp.eq.s32.totalorder %s23, 0
      %p81 = por %p79, %p80
      %p82 = scmp.ne.s32.totalorder %s71, %s74
      %p83 = scmp.eq.s32.totalorder %s28, 3
      %p84 = por %p82, %p83
      %p85 = scmp.ne.s32.totalorder %s74, %s75
      %p86 = scmp.eq.s32.totalorder %s28, 0
      %p87 = por %p85, %p86
      %p88 = scmp.ne.s32.totalorder %s74, %s75
      %p89 = scmp.eq.s32.totalorder %s29, 3
      %p90 = por %p88, %p89
      %p92 = scmp.ne.s32.totalorder %s75, %s91
      %p93 = scmp.eq.s32.totalorder %s29, 0
      %p94 = por %p92, %p93
      %s96 = sadd.s32 %s95, 1
      %p99 = scmp.eq.s32.totalorder %s23, 3
      %p100 = scmp.ne.s32.totalorder %s95, %s97
      %p101 = scmp.eq.s32.totalorder %s23, 0
      %p102 = por %p100, %p101
      %p103 = scmp.ne.s32.totalorder %s95, %s97
      %p104 = scmp.eq.s32.totalorder %s28, 3
      %p105 = por %p103, %p104
      %p106 = scmp.ne.s32.totalorder %s97, %s98
      %p107 = scmp.eq.s32.totalorder %s28, 0
      %p108 = por %p106, %p107
      %p109 = scmp.ne.s32.totalorder %s97, %s98
      %p110 = scmp.eq.s32.totalorder %s29, 3
      %p111 = por %p109, %p110
      %p113 = scmp.ne.s32.totalorder %s98, %s112
      %p114 = scmp.eq.s32.totalorder %s29, 0
      %p115 = por %p113, %p114
      %s116 = ssub.s32 %s31, %s38
      %p117 = scmp.eq.s32.totalorder %s116, 0
      %s119 = sadd.s32 %s118, 1
      %s120 = scalar_select %p117, %s118, %s119
      %p123 = pneg %p117
      %p124 = scmp.eq.s32.totalorder %s23, 3
      %p125 = por %p123, %p124
      %p126 = scmp.ne.s32.totalorder %s118, %s121
      %p127 = scmp.eq.s32.totalorder %s23, 0
      %p128 = por %p126, %p127
      %p129 = scmp.ne.s32.totalorder %s118, %s121
      %p130 = scmp.eq.s32.totalorder %s28, 3
      %p131 = por %p129, %p130
      %p132 = scmp.ne.s32.totalorder %s121, %s122
      %p133 = scmp.eq.s32.totalorder %s28, 0
      %p134 = por %p132, %p133
      %p135 = scmp.ne.s32.totalorder %s121, %s122
      %p136 = scmp.eq.s32.totalorder %s29, 3
      %p137 = por %p135, %p136
      %p139 = scmp.ne.s32.totalorder %s122, %s138
      %p140 = scmp.eq.s32.totalorder %s29, 0
      %p141 = por %p139, %p140
      %s143 = sadd.s32 %s142, 1
      %p146 = scmp.eq.s32.totalorder %s23, 3
      %p147 = scmp.ne.s32.totalorder %s142, %s144
      %p148 = scmp.eq.s32.totalorder %s23, 0
      %p149 = por %p147, %p148
      %p150 = scmp.ne.s32.totalorder %s142, %s144
      %p151 = scmp.eq.s32.totalorder %s28, 3
      %p152 = por %p150, %p151
      %p153 = scmp.ne.s32.totalorder %s144, %s145
      %p154 = scmp.eq.s32.totalorder %s28, 0
      %p155 = por %p153, %p154
      %p156 = scmp.ne.s32.totalorder %s144, %s145
      %p157 = scmp.eq.s32.totalorder %s29, 3
      %p158 = por %p156, %p157
      %p160 = scmp.ne.s32.totalorder %s145, %s159
      %p161 = scmp.eq.s32.totalorder %s29, 0
      %p162 = por %p160, %p161
      %s163 = ssub.s32 %s30, %s42
      %p164 = scmp.eq.s32.totalorder %s163, 0
      %s166 = sadd.s32 %s165, 1
      %s167 = scalar_select %p164, %s165, %s166
      %p170 = pneg %p164
      %p171 = scmp.eq.s32.totalorder %s23, 3
      %p172 = por %p170, %p171
      %p173 = scmp.ne.s32.totalorder %s165, %s168
      %p174 = scmp.eq.s32.totalorder %s23, 0
      %p175 = por %p173, %p174
      %p176 = scmp.ne.s32.totalorder %s165, %s168
      %p177 = scmp.eq.s32.totalorder %s28, 3
      %p178 = por %p176, %p177
      %p179 = scmp.ne.s32.totalorder %s168, %s169
      %p180 = scmp.eq.s32.totalorder %s28, 0
      %p181 = por %p179, %p180
      %p182 = scmp.ne.s32.totalorder %s168, %s169
      %p183 = scmp.eq.s32.totalorder %s29, 3
      %p184 = por %p182, %p183
      %p186 = scmp.ne.s32.totalorder %s169, %s185
      %p187 = scmp.eq.s32.totalorder %s29, 0
      %p188 = por %p186, %p187
      %p189 = scmp.le.s32.totalorder 1, %s23
      %p190 = scmp.lt.s32.totalorder %s23, 5
      %p191 = pnand %p189, %p190
      %p192 = pneg %p191
      // Predicated region
      $region9: #{tpu_custom_call.1} parent=5 // pred_check
        _
      $region10: #{tpu_custom_call.1} parent=5 // pred_check_branch
        %194 = sbr.rel (%p191) target = $region12
      $region11: #{tpu_custom_call.1} parent=5 // pred_region
        %s195 = ssub.s32 %s23, 1
        // Predicated region
        $region13: #{tpu_custom_call.1} parent=11 // pred_check
          %p196 = pneg %p108
        $region14: #{tpu_custom_call.1} parent=11 // pred_check_branch
          %198 = sbr.rel (%p196) target = $region16
        $region15: #{tpu_custom_call.1} parent=11 // pred_region
          %s200 = ssub.s32 128, 128
          %201 = vsyncadd [#allocation6], %s200
          %s203 = sshll.u32 [#allocation7], 4
          %s204 = int_to_ptr.vmem [resolvable:$true] %s203
          %206 = dma.hbm_to_vmem [thread:$0]  %s2, 128, %s204, [#allocation6]
        $region16: #{tpu_custom_call.1} parent=11 // pred_fallthru
          _
        // Predicated region
        $region17: #{tpu_custom_call.1} parent=11 // pred_check
          %p207 = pneg %p155
        $region18: #{tpu_custom_call.1} parent=11 // pred_check_branch
          %209 = sbr.rel (%p207) target = $region20
        $region19: #{tpu_custom_call.1} parent=11 // pred_region
          _
        $region20: #{tpu_custom_call.1} parent=11 // pred_fallthru
          _
      $region12: #{tpu_custom_call.1} parent=5 // pred_fallthru
        _
      %p210 = scmp.lt.s32.totalorder %s23, 4
      // Predicated region
      $region21: #{tpu_custom_call.1} parent=5 // pred_check
        %p211 = pneg %p210
      $region22: #{tpu_custom_call.1} parent=5 // pred_check_branch
        %213 = sbr.rel (%p211) target = $region24
      $region23: #{tpu_custom_call.1} parent=5 // pred_region
        // Predicated region
        $region25: #{tpu_custom_call.1} parent=23 // pred_check
          %p214 = pneg %p55
        $region26: #{tpu_custom_call.1} parent=23 // pred_check_branch
          %216 = sbr.rel (%p214) target = $region28
        $region27: #{tpu_custom_call.1} parent=23 // pred_region
          %s217 = sand.u32 %s45, 1
          %s218 = scalar_lea.sflag [#allocation3], %s217
          %s219 = sand.u32 %s45, 1
          %s220 = smul.addr %s219, 128
          %s221 = scalar_lea.vmem [#allocation2], %s220
          %s222 = smul.u32 16, %s30
          %s224 = ssub.s32 2048, 2048
          %225 = vsyncadd %s218, %s224
          %s226 = smul.addr %s222, 2
          %s227 = smul.addr %s226, 64
          %s228 = scalar_lea.hbm %s0, %s227
          %s229 = sshll.u32 %s221, 4
          %s230 = int_to_ptr.vmem [resolvable:$true] %s229
          %235 = dma.hbm_to_vmem [thread:$0]  %s228, 2048, %s230, %s218, 128, 128, 8
        $region28: #{tpu_custom_call.1} parent=23 // pred_fallthru
          _
        // Predicated region
        $region29: #{tpu_custom_call.1} parent=23 // pred_check
          %p236 = pneg %p81
        $region30: #{tpu_custom_call.1} parent=23 // pred_check_branch
          %238 = sbr.rel (%p236) target = $region32
        $region31: #{tpu_custom_call.1} parent=23 // pred_region
          %s239 = sand.u32 %s23, 1
          %s240 = scalar_lea.sflag [#allocation6], %s239
          %s241 = sand.u32 %s71, 1
          %s242 = smul.addr %s241, 512
          %s243 = scalar_lea.vmem [#allocation5], %s242
          %s244 = smul.u32 64, %s31
          %s246 = ssub.s32 8192, 8192
          %247 = vsyncadd %s240, %s246
          %s248 = smul.addr %s244, 2
          %s249 = smul.addr %s248, 64
          %s250 = scalar_lea.hbm %s1, %s249
          %s251 = sshll.u32 %s243, 4
          %s252 = int_to_ptr.vmem [resolvable:$true] %s251
          %257 = dma.hbm_to_vmem [thread:$0]  %s250, 8192, %s252, %s240, 128, 128, 8
        $region32: #{tpu_custom_call.1} parent=23 // pred_fallthru
          _
        // Predicated region
        $region33: #{tpu_custom_call.1} parent=23 // pred_check
          %p258 = pneg %p128
        $region34: #{tpu_custom_call.1} parent=23 // pred_check_branch
          %260 = sbr.rel (%p258) target = $region36
        $region35: #{tpu_custom_call.1} parent=23 // pred_region
          %s261 = sand.u32 %s118, 1
          %s262 = scalar_lea.sflag [#allocation9], %s261
          %s263 = sand.u32 %s118, 1
          %s264 = smul.addr %s263, 512
          %s265 = scalar_lea.vmem [#allocation8], %s264
          %s266 = smul.u32 64, %s31
          %s268 = ssub.s32 8192, 8192
          %269 = vsyncadd %s262, %s268
          %s270 = smul.addr %s266, 2
          %s271 = smul.addr %s270, 64
          %s272 = scalar_lea.hbm %s3, %s271
          %s273 = sshll.u32 %s265, 4
          %s274 = int_to_ptr.vmem [resolvable:$true] %s273
          %279 = dma.hbm_to_vmem [thread:$0]  %s272, 8192, %s274, %s262, 128, 128, 8
        $region36: #{tpu_custom_call.1} parent=23 // pred_fallthru
          _
      $region24: #{tpu_custom_call.1} parent=5 // pred_fallthru
        _
      %p280 = scmp.le.s32.totalorder 1, %s23
      %p281 = scmp.lt.s32.totalorder %s23, 5
      %p282 = pnand %p280, %p281
      %p283 = pneg %p282
      // Predicated region
      $region37: #{tpu_custom_call.1} parent=5 // pred_check
        _
      $region38: #{tpu_custom_call.1} parent=5 // pred_check_branch
        %285 = sbr.rel (%p282) target = $region40
      $region39: #{tpu_custom_call.1} parent=5 // pred_region
        %s286 = ssub.s32 %s23, 1
        %s287 = sand.u32 %s48, 1
        %s288 = scalar_lea.sflag [#allocation3], %s287
        %s289 = sand.u32 %s48, 1
        %s290 = smul.addr %s289, 128
        %s291 = scalar_lea.vmem [#allocation2], %s290
        // Predicated region
        $region41: #{tpu_custom_call.1} parent=39 // pred_check
          %p292 = pneg %p61
        $region42: #{tpu_custom_call.1} parent=39 // pred_check_branch
          %294 = sbr.rel (%p292) target = $region44
        $region43: #{tpu_custom_call.1} parent=39 // pred_region
          %295 = dma.done %s288, 2048
        $region44: #{tpu_custom_call.1} parent=39 // pred_fallthru
          _
        %s296 = sand.u32 %s28, 1
        %s297 = scalar_lea.sflag [#allocation6], %s296
        %s298 = sand.u32 %s74, 1
        %s299 = smul.addr %s298, 512
        %s300 = scalar_lea.vmem [#allocation5], %s299
        // Predicated region
        $region45: #{tpu_custom_call.1} parent=39 // pred_check
          %p301 = pneg %p87
        $region46: #{tpu_custom_call.1} parent=39 // pred_check_branch
          %303 = sbr.rel (%p301) target = $region48
        $region47: #{tpu_custom_call.1} parent=39 // pred_region
          %304 = dma.done %s297, 8192
        $region48: #{tpu_custom_call.1} parent=39 // pred_fallthru
          _
        // Predicated region
        $region49: #{tpu_custom_call.1} parent=39 // pred_check
          %p305 = pneg %p108
        $region50: #{tpu_custom_call.1} parent=39 // pred_check_branch
          %307 = sbr.rel (%p305) target = $region52
        $region51: #{tpu_custom_call.1} parent=39 // pred_region
          %308 = dma.done [#allocation6], 128
        $region52: #{tpu_custom_call.1} parent=39 // pred_fallthru
          _
        %s309 = sand.u32 %s121, 1
        %s310 = scalar_lea.sflag [#allocation9], %s309
        %s311 = sand.u32 %s121, 1
        %s312 = smul.addr %s311, 512
        %s313 = scalar_lea.vmem [#allocation8], %s312
        // Predicated region
        $region53: #{tpu_custom_call.1} parent=39 // pred_check
          %p314 = pneg %p134
        $region54: #{tpu_custom_call.1} parent=39 // pred_check_branch
          %316 = sbr.rel (%p314) target = $region56
        $region55: #{tpu_custom_call.1} parent=39 // pred_region
          %317 = dma.done %s310, 8192
        $region56: #{tpu_custom_call.1} parent=39 // pred_fallthru
          _
        %s318 = sand.u32 %s48, 1
        %s319 = scalar_lea.sflag [#allocation3], %s318
        %s320 = sand.u32 %s48, 1
        %s321 = smul.addr %s320, 128
        %s322 = scalar_lea.vmem [#allocation2], %s321
        %p323 = pneg %p61
        %p324 = pneg %p58
        %s325 = sand.u32 %s28, 1
        %s326 = scalar_lea.sflag [#allocation6], %s325
        %s327 = sand.u32 %s74, 1
        %s328 = smul.addr %s327, 512
        %s329 = scalar_lea.vmem [#allocation5], %s328
        %p330 = pneg %p87
        %p331 = pneg %p84
        %p332 = pneg %p108
        %p333 = pneg %p105
        %s334 = sand.u32 %s121, 1
        %s335 = scalar_lea.sflag [#allocation9], %s334
        %s336 = sand.u32 %s121, 1
        %s337 = smul.addr %s336, 512
        %s338 = scalar_lea.vmem [#allocation8], %s337
        %p339 = pneg %p134
        %p340 = pneg %p131
        %p341 = pneg %p155
        %p342 = pneg %p152
        %p343 = pneg %p181
        %p344 = pneg %p178
        %s345 = sand.u32 %s168, 1
        %s346 = scalar_lea.sflag [#allocation4], %s345
        %s347 = sand.u32 %s168, 1
        %s348 = smul.addr %s347, 256
        %s349 = scalar_lea.vmem [#allocation10], %s348
        %s350 = smul.u32 16, %s32
        %s351 = smul.u32 64, %s33
        %s352 = smul.u32 64, %s33
        %s353 = smul.u32 16, %s32
        %p354 = scmp.eq.s32.totalorder %s33, 0
        // Predicated region
        $region57: #{tpu_custom_call.1} parent=39 // pred_check
          %p355 = pneg %p354
        $region58: #{tpu_custom_call.1} parent=39 // pred_check_branch
          %357 = sbr.rel (%p355) target = $region60
        $region59: #{tpu_custom_call.1} parent=39 // pred_region
          %358 = vst [vmem:[%s349] sm:$0xff] 0.0
          %359 = vst [vmem:[%s349 + $0x8] sm:$0xff] 0.0
          %360 = vst [vmem:[%s349 + $0x10] sm:$0xff] 0.0
          %361 = vst [vmem:[%s349 + $0x18] sm:$0xff] 0.0
          %362 = vst [vmem:[%s349 + $0x20] sm:$0xff] 0.0
          %363 = vst [vmem:[%s349 + $0x28] sm:$0xff] 0.0
          %364 = vst [vmem:[%s349 + $0x30] sm:$0xff] 0.0
          %365 = vst [vmem:[%s349 + $0x38] sm:$0xff] 0.0
          %366 = vst [vmem:[%s349 + $0x40] sm:$0xff] 0.0
          %367 = vst [vmem:[%s349 + $0x48] sm:$0xff] 0.0
          %368 = vst [vmem:[%s349 + $0x50] sm:$0xff] 0.0
          %369 = vst [vmem:[%s349 + $0x58] sm:$0xff] 0.0
          %370 = vst [vmem:[%s349 + $0x60] sm:$0xff] 0.0
          %371 = vst [vmem:[%s349 + $0x68] sm:$0xff] 0.0
          %372 = vst [vmem:[%s349 + $0x70] sm:$0xff] 0.0
          %373 = vst [vmem:[%s349 + $0x78] sm:$0xff] 0.0
          %374 = vst [vmem:[%s349 + $0x80] sm:$0xff] 0.0
          %375 = vst [vmem:[%s349 + $0x88] sm:$0xff] 0.0
          %376 = vst [vmem:[%s349 + $0x90] sm:$0xff] 0.0
          %377 = vst [vmem:[%s349 + $0x98] sm:$0xff] 0.0
          %378 = vst [vmem:[%s349 + $0xa0] sm:$0xff] 0.0
          %379 = vst [vmem:[%s349 + $0xa8] sm:$0xff] 0.0
          %380 = vst [vmem:[%s349 + $0xb0] sm:$0xff] 0.0
          %381 = vst [vmem:[%s349 + $0xb8] sm:$0xff] 0.0
          %382 = vst [vmem:[%s349 + $0xc0] sm:$0xff] 0.0
          %383 = vst [vmem:[%s349 + $0xc8] sm:$0xff] 0.0
          %384 = vst [vmem:[%s349 + $0xd0] sm:$0xff] 0.0
          %385 = vst [vmem:[%s349 + $0xd8] sm:$0xff] 0.0
          %386 = vst [vmem:[%s349 + $0xe0] sm:$0xff] 0.0
          %387 = vst [vmem:[%s349 + $0xe8] sm:$0xff] 0.0
          %388 = vst [vmem:[%s349 + $0xf0] sm:$0xff] 0.0
          %389 = vst [vmem:[%s349 + $0xf8] sm:$0xff] 0.0
        $region60: #{tpu_custom_call.1} parent=39 // pred_fallthru
          _
        %v390 = vld [vmem:[%s291] sm:$0xff]
        %v391 = vld [vmem:[%s291 + $0x8] sm:$0xff]
        %v392 = vld [vmem:[%s291 + $0x10] sm:$0xff]
        %v393 = vld [vmem:[%s291 + $0x18] sm:$0xff]
        %v394 = vld [vmem:[%s291 + $0x20] sm:$0xff]
        %v395 = vld [vmem:[%s291 + $0x28] sm:$0xff]
        %v396 = vld [vmem:[%s291 + $0x30] sm:$0xff]
        %v397 = vld [vmem:[%s291 + $0x38] sm:$0xff]
        %v398 = vld [vmem:[%s291 + $0x40] sm:$0xff]
        %v399 = vld [vmem:[%s291 + $0x48] sm:$0xff]
        %v400 = vld [vmem:[%s291 + $0x50] sm:$0xff]
        %v401 = vld [vmem:[%s291 + $0x58] sm:$0xff]
        %v402 = vld [vmem:[%s291 + $0x60] sm:$0xff]
        %v403 = vld [vmem:[%s291 + $0x68] sm:$0xff]
        %v404 = vld [vmem:[%s291 + $0x70] sm:$0xff]
        %v405 = vld [vmem:[%s291 + $0x78] sm:$0xff]
        %v406 = vld [vmem:[%s300] sm:$0xff]
        %v407 = vld [vmem:[%s300 + $0x8] sm:$0xff]
        %v408 = vld [vmem:[%s300 + $0x10] sm:$0xff]
        %v409 = vld [vmem:[%s300 + $0x18] sm:$0xff]
        %v410 = vld [vmem:[%s300 + $0x20] sm:$0xff]
        %v411 = vld [vmem:[%s300 + $0x28] sm:$0xff]
        %v412 = vld [vmem:[%s300 + $0x30] sm:$0xff]
        %v413 = vld [vmem:[%s300 + $0x38] sm:$0xff]
        %v414 = vld [vmem:[%s300 + $0x40] sm:$0xff]
        %v415 = vld [vmem:[%s300 + $0x48] sm:$0xff]
        %v416 = vld [vmem:[%s300 + $0x50] sm:$0xff]
        %v417 = vld [vmem:[%s300 + $0x58] sm:$0xff]
        %v418 = vld [vmem:[%s300 + $0x60] sm:$0xff]
        %v419 = vld [vmem:[%s300 + $0x68] sm:$0xff]
        %v420 = vld [vmem:[%s300 + $0x70] sm:$0xff]
        %v421 = vld [vmem:[%s300 + $0x78] sm:$0xff]
        %v422 = vld [vmem:[%s300 + $0x80] sm:$0xff]
        %v423 = vld [vmem:[%s300 + $0x88] sm:$0xff]
        %v424 = vld [vmem:[%s300 + $0x90] sm:$0xff]
        %v425 = vld [vmem:[%s300 + $0x98] sm:$0xff]
        %v426 = vld [vmem:[%s300 + $0xa0] sm:$0xff]
        %v427 = vld [vmem:[%s300 + $0xa8] sm:$0xff]
        %v428 = vld [vmem:[%s300 + $0xb0] sm:$0xff]
        %v429 = vld [vmem:[%s300 + $0xb8] sm:$0xff]
        %v430 = vld [vmem:[%s300 + $0xc0] sm:$0xff]
        %v431 = vld [vmem:[%s300 + $0xc8] sm:$0xff]
        %v432 = vld [vmem:[%s300 + $0xd0] sm:$0xff]
        %v433 = vld [vmem:[%s300 + $0xd8] sm:$0xff]
        %v434 = vld [vmem:[%s300 + $0xe0] sm:$0xff]
        %v435 = vld [vmem:[%s300 + $0xe8] sm:$0xff]
        %v436 = vld [vmem:[%s300 + $0xf0] sm:$0xff]
        %v437 = vld [vmem:[%s300 + $0xf8] sm:$0xff]
        %v438 = vld [vmem:[%s300 + $0x100] sm:$0xff]
        %v439 = vld [vmem:[%s300 + $0x108] sm:$0xff]
        %v440 = vld [vmem:[%s300 + $0x110] sm:$0xff]
        %v441 = vld [vmem:[%s300 + $0x118] sm:$0xff]
        %v442 = vld [vmem:[%s300 + $0x120] sm:$0xff]
        %v443 = vld [vmem:[%s300 + $0x128] sm:$0xff]
        %v444 = vld [vmem:[%s300 + $0x130] sm:$0xff]
        %v445 = vld [vmem:[%s300 + $0x138] sm:$0xff]
        %v446 = vld [vmem:[%s300 + $0x140] sm:$0xff]
        %v447 = vld [vmem:[%s300 + $0x148] sm:$0xff]
        %v448 = vld [vmem:[%s300 + $0x150] sm:$0xff]
        %v449 = vld [vmem:[%s300 + $0x158] sm:$0xff]
        %v450 = vld [vmem:[%s300 + $0x160] sm:$0xff]
        %v451 = vld [vmem:[%s300 + $0x168] sm:$0xff]
        %v452 = vld [vmem:[%s300 + $0x170] sm:$0xff]
        %v453 = vld [vmem:[%s300 + $0x178] sm:$0xff]
        %v454 = vld [vmem:[%s300 + $0x180] sm:$0xff]
        %v455 = vld [vmem:[%s300 + $0x188] sm:$0xff]
        %v456 = vld [vmem:[%s300 + $0x190] sm:$0xff]
        %v457 = vld [vmem:[%s300 + $0x198] sm:$0xff]
        %v458 = vld [vmem:[%s300 + $0x1a0] sm:$0xff]
        %v459 = vld [vmem:[%s300 + $0x1a8] sm:$0xff]
        %v460 = vld [vmem:[%s300 + $0x1b0] sm:$0xff]
        %v461 = vld [vmem:[%s300 + $0x1b8] sm:$0xff]
        %v462 = vld [vmem:[%s300 + $0x1c0] sm:$0xff]
        %v463 = vld [vmem:[%s300 + $0x1c8] sm:$0xff]
        %v464 = vld [vmem:[%s300 + $0x1d0] sm:$0xff]
        %v465 = vld [vmem:[%s300 + $0x1d8] sm:$0xff]
        %v466 = vld [vmem:[%s300 + $0x1e0] sm:$0xff]
        %v467 = vld [vmem:[%s300 + $0x1e8] sm:$0xff]
        %v468 = vld [vmem:[%s300 + $0x1f0] sm:$0xff]
        %v469 = vld [vmem:[%s300 + $0x1f8] sm:$0xff]
        %s470 = sshra.s32 %s33, 1
        %s471 = sand.u32 %s33, 1
        %s472 = sshra.s32 %s33, 1
        %s473 = sand.u32 %s33, 1
        %s474 = smul.u32 %s470, 4
        %s475 = smul.u32 %s474, 2
        %s476 = sadd.s32 %s475, %s473
        %s477 = scalar_lea.vmem [#allocation7], %s476
        %v478 = vld [vmem:[%s477] ss:$2 sm:$0xf]
        %v480 = vlaneseq
        %v481 = vshrl.u32 %v480, 7
        %v482 = vsub.s32 0, %v481
        %v483 = vrot.slane %v478, %v482
        %v484 = vlaneseq
        %v485 = vshrl.u32 %v484, 7
        %v486 = vsub.s32 1, %v485
        %v487 = vrot.slane %v478, %v486
        %v488 = vlaneseq
        %v489 = vshrl.u32 %v488, 7
        %v490 = vsub.s32 2, %v489
        %v491 = vrot.slane %v478, %v490
        %v492 = vlaneseq
        %v493 = vshrl.u32 %v492, 7
        %v494 = vsub.s32 3, %v493
        %v495 = vrot.slane %v478, %v494
        %v516 = vunpack.c.l.b16 %v390
        %v517 = vunpack.c.h.b16 %v390
        %v518 = vunpack.c.l.b16 %v391
        %v519 = vunpack.c.h.b16 %v391
        %v520 = vunpack.c.l.b16 %v392
        %v521 = vunpack.c.h.b16 %v392
        %v522 = vunpack.c.l.b16 %v393
        %v523 = vunpack.c.h.b16 %v393
        %v524 = vunpack.c.l.b16 %v394
        %v525 = vunpack.c.h.b16 %v394
        %v526 = vunpack.c.l.b16 %v395
        %v527 = vunpack.c.h.b16 %v395
        %v528 = vunpack.c.l.b16 %v396
        %v529 = vunpack.c.h.b16 %v396
        %v530 = vunpack.c.l.b16 %v397
        %v531 = vunpack.c.h.b16 %v397
        %v532 = vunpack.c.l.b16 %v398
        %v533 = vunpack.c.h.b16 %v398
        %v534 = vunpack.c.l.b16 %v399
        %v535 = vunpack.c.h.b16 %v399
        %v536 = vunpack.c.l.b16 %v400
        %v537 = vunpack.c.h.b16 %v400
        %v538 = vunpack.c.l.b16 %v401
        %v539 = vunpack.c.h.b16 %v401
        %v540 = vunpack.c.l.b16 %v402
        %v541 = vunpack.c.h.b16 %v402
        %v542 = vunpack.c.l.b16 %v403
        %v543 = vunpack.c.h.b16 %v403
        %v544 = vunpack.c.l.b16 %v404
        %v545 = vunpack.c.h.b16 %v404
        %v546 = vunpack.c.l.b16 %v405
        %v547 = vunpack.c.h.b16 %v405
        %v548 = vpack.c.b16 %v518, %v516
        %v549 = vpack.c.b16 %v519, %v517
        %v550 = vpack.c.b16 %v522, %v520
        %v551 = vpack.c.b16 %v523, %v521
        %v552 = vpack.c.b16 %v526, %v524
        %v553 = vpack.c.b16 %v527, %v525
        %v554 = vpack.c.b16 %v530, %v528
        %v555 = vpack.c.b16 %v531, %v529
        %v556 = vpack.c.b16 %v534, %v532
        %v557 = vpack.c.b16 %v535, %v533
        %v558 = vpack.c.b16 %v538, %v536
        %v559 = vpack.c.b16 %v539, %v537
        %v560 = vpack.c.b16 %v542, %v540
        %v561 = vpack.c.b16 %v543, %v541
        %v562 = vpack.c.b16 %v546, %v544
        %v563 = vpack.c.b16 %v547, %v545
        %v644 = vunpack.c.l.b16 %v406
        %v645 = vunpack.c.h.b16 %v406
        %v646 = vunpack.c.l.b16 %v407
        %v647 = vunpack.c.h.b16 %v407
        %v648 = vunpack.c.l.b16 %v408
        %v649 = vunpack.c.h.b16 %v408
        %v650 = vunpack.c.l.b16 %v409
        %v651 = vunpack.c.h.b16 %v409
        %v652 = vunpack.c.l.b16 %v410
        %v653 = vunpack.c.h.b16 %v410
        %v654 = vunpack.c.l.b16 %v411
        %v655 = vunpack.c.h.b16 %v411
        %v656 = vunpack.c.l.b16 %v412
        %v657 = vunpack.c.h.b16 %v412
        %v658 = vunpack.c.l.b16 %v413
        %v659 = vunpack.c.h.b16 %v413
        %v660 = vunpack.c.l.b16 %v414
        %v661 = vunpack.c.h.b16 %v414
        %v662 = vunpack.c.l.b16 %v415
        %v663 = vunpack.c.h.b16 %v415
        %v664 = vunpack.c.l.b16 %v416
        %v665 = vunpack.c.h.b16 %v416
        %v666 = vunpack.c.l.b16 %v417
        %v667 = vunpack.c.h.b16 %v417
        %v668 = vunpack.c.l.b16 %v418
        %v669 = vunpack.c.h.b16 %v418
        %v670 = vunpack.c.l.b16 %v419
        %v671 = vunpack.c.h.b16 %v419
        %v672 = vunpack.c.l.b16 %v420
        %v673 = vunpack.c.h.b16 %v420
        %v674 = vunpack.c.l.b16 %v421
        %v675 = vunpack.c.h.b16 %v421
        %v676 = vunpack.c.l.b16 %v422
        %v677 = vunpack.c.h.b16 %v422
        %v678 = vunpack.c.l.b16 %v423
        %v679 = vunpack.c.h.b16 %v423
        %v680 = vunpack.c.l.b16 %v424
        %v681 = vunpack.c.h.b16 %v424
        %v682 = vunpack.c.l.b16 %v425
        %v683 = vunpack.c.h.b16 %v425
        %v684 = vunpack.c.l.b16 %v426
        %v685 = vunpack.c.h.b16 %v426
        %v686 = vunpack.c.l.b16 %v427
        %v687 = vunpack.c.h.b16 %v427
        %v688 = vunpack.c.l.b16 %v428
        %v689 = vunpack.c.h.b16 %v428
        %v690 = vunpack.c.l.b16 %v429
        %v691 = vunpack.c.h.b16 %v429
        %v692 = vunpack.c.l.b16 %v430
        %v693 = vunpack.c.h.b16 %v430
        %v694 = vunpack.c.l.b16 %v431
        %v695 = vunpack.c.h.b16 %v431
        %v696 = vunpack.c.l.b16 %v432
        %v697 = vunpack.c.h.b16 %v432
        %v698 = vunpack.c.l.b16 %v433
        %v699 = vunpack.c.h.b16 %v433
        %v700 = vunpack.c.l.b16 %v434
        %v701 = vunpack.c.h.b16 %v434
        %v702 = vunpack.c.l.b16 %v435
        %v703 = vunpack.c.h.b16 %v435
        %v704 = vunpack.c.l.b16 %v436
        %v705 = vunpack.c.h.b16 %v436
        %v706 = vunpack.c.l.b16 %v437
        %v707 = vunpack.c.h.b16 %v437
        %v708 = vunpack.c.l.b16 %v438
        %v709 = vunpack.c.h.b16 %v438
        %v710 = vunpack.c.l.b16 %v439
        %v711 = vunpack.c.h.b16 %v439
        %v712 = vunpack.c.l.b16 %v440
        %v713 = vunpack.c.h.b16 %v440
        %v714 = vunpack.c.l.b16 %v441
        %v715 = vunpack.c.h.b16 %v441
        %v716 = vunpack.c.l.b16 %v442
        %v717 = vunpack.c.h.b16 %v442
        %v718 = vunpack.c.l.b16 %v443
        %v719 = vunpack.c.h.b16 %v443
        %v720 = vunpack.c.l.b16 %v444
        %v721 = vunpack.c.h.b16 %v444
        %v722 = vunpack.c.l.b16 %v445
        %v723 = vunpack.c.h.b16 %v445
        %v724 = vunpack.c.l.b16 %v446
        %v725 = vunpack.c.h.b16 %v446
        %v726 = vunpack.c.l.b16 %v447
        %v727 = vunpack.c.h.b16 %v447
        %v728 = vunpack.c.l.b16 %v448
        %v729 = vunpack.c.h.b16 %v448
        %v730 = vunpack.c.l.b16 %v449
        %v731 = vunpack.c.h.b16 %v449
        %v732 = vunpack.c.l.b16 %v450
        %v733 = vunpack.c.h.b16 %v450
        %v734 = vunpack.c.l.b16 %v451
        %v735 = vunpack.c.h.b16 %v451
        %v736 = vunpack.c.l.b16 %v452
        %v737 = vunpack.c.h.b16 %v452
        %v738 = vunpack.c.l.b16 %v453
        %v739 = vunpack.c.h.b16 %v453
        %v740 = vunpack.c.l.b16 %v454
        %v741 = vunpack.c.h.b16 %v454
        %v742 = vunpack.c.l.b16 %v455
        %v743 = vunpack.c.h.b16 %v455
        %v744 = vunpack.c.l.b16 %v456
        %v745 = vunpack.c.h.b16 %v456
        %v746 = vunpack.c.l.b16 %v457
        %v747 = vunpack.c.h.b16 %v457
        %v748 = vunpack.c.l.b16 %v458
        %v749 = vunpack.c.h.b16 %v458
        %v750 = vunpack.c.l.b16 %v459
        %v751 = vunpack.c.h.b16 %v459
        %v752 = vunpack.c.l.b16 %v460
        %v753 = vunpack.c.h.b16 %v460
        %v754 = vunpack.c.l.b16 %v461
        %v755 = vunpack.c.h.b16 %v461
        %v756 = vunpack.c.l.b16 %v462
        %v757 = vunpack.c.h.b16 %v462
        %v758 = vunpack.c.l.b16 %v463
        %v759 = vunpack.c.h.b16 %v463
        %v760 = vunpack.c.l.b16 %v464
        %v761 = vunpack.c.h.b16 %v464
        %v762 = vunpack.c.l.b16 %v465
        %v763 = vunpack.c.h.b16 %v465
        %v764 = vunpack.c.l.b16 %v466
        %v765 = vunpack.c.h.b16 %v466
        %v766 = vunpack.c.l.b16 %v467
        %v767 = vunpack.c.h.b16 %v467
        %v768 = vunpack.c.l.b16 %v468
        %v769 = vunpack.c.h.b16 %v468
        %v770 = vunpack.c.l.b16 %v469
        %v771 = vunpack.c.h.b16 %v469
        %v772 = vpack.c.b16 %v646, %v644
        %v773 = vpack.c.b16 %v647, %v645
        %v774 = vpack.c.b16 %v650, %v648
        %v775 = vpack.c.b16 %v651, %v649
        %v776 = vpack.c.b16 %v654, %v652
        %v777 = vpack.c.b16 %v655, %v653
        %v778 = vpack.c.b16 %v658, %v656
        %v779 = vpack.c.b16 %v659, %v657
        %v780 = vpack.c.b16 %v662, %v660
        %v781 = vpack.c.b16 %v663, %v661
        %v782 = vpack.c.b16 %v666, %v664
        %v783 = vpack.c.b16 %v667, %v665
        %v784 = vpack.c.b16 %v670, %v668
        %v785 = vpack.c.b16 %v671, %v669
        %v786 = vpack.c.b16 %v674, %v672
        %v787 = vpack.c.b16 %v675, %v673
        %v788 = vpack.c.b16 %v678, %v676
        %v789 = vpack.c.b16 %v679, %v677
        %v790 = vpack.c.b16 %v682, %v680
        %v791 = vpack.c.b16 %v683, %v681
        %v792 = vpack.c.b16 %v686, %v684
        %v793 = vpack.c.b16 %v687, %v685
        %v794 = vpack.c.b16 %v690, %v688
        %v795 = vpack.c.b16 %v691, %v689
        %v796 = vpack.c.b16 %v694, %v692
        %v797 = vpack.c.b16 %v695, %v693
        %v798 = vpack.c.b16 %v698, %v696
        %v799 = vpack.c.b16 %v699, %v697
        %v800 = vpack.c.b16 %v702, %v700
        %v801 = vpack.c.b16 %v703, %v701
        %v802 = vpack.c.b16 %v706, %v704
        %v803 = vpack.c.b16 %v707, %v705
        %v804 = vpack.c.b16 %v710, %v708
        %v805 = vpack.c.b16 %v711, %v709
        %v806 = vpack.c.b16 %v714, %v712
        %v807 = vpack.c.b16 %v715, %v713
        %v808 = vpack.c.b16 %v718, %v716
        %v809 = vpack.c.b16 %v719, %v717
        %v810 = vpack.c.b16 %v722, %v720
        %v811 = vpack.c.b16 %v723, %v721
        %v812 = vpack.c.b16 %v726, %v724
        %v813 = vpack.c.b16 %v727, %v725
        %v814 = vpack.c.b16 %v730, %v728
        %v815 = vpack.c.b16 %v731, %v729
        %v816 = vpack.c.b16 %v734, %v732
        %v817 = vpack.c.b16 %v735, %v733
        %v818 = vpack.c.b16 %v738, %v736
        %v819 = vpack.c.b16 %v739, %v737
        %v820 = vpack.c.b16 %v742, %v740
        %v821 = vpack.c.b16 %v743, %v741
        %v822 = vpack.c.b16 %v746, %v744
        %v823 = vpack.c.b16 %v747, %v745
        %v824 = vpack.c.b16 %v750, %v748
        %v825 = vpack.c.b16 %v751, %v749
        %v826 = vpack.c.b16 %v754, %v752
        %v827 = vpack.c.b16 %v755, %v753
        %v828 = vpack.c.b16 %v758, %v756
        %v829 = vpack.c.b16 %v759, %v757
        %v830 = vpack.c.b16 %v762, %v760
        %v831 = vpack.c.b16 %v763, %v761
        %v832 = vpack.c.b16 %v766, %v764
        %v833 = vpack.c.b16 %v767, %v765
        %v834 = vpack.c.b16 %v770, %v768
        %v835 = vpack.c.b16 %v771, %v769
        %900 = vmatprep.subr.bf16.mxu0 %v773
        %901 = vmatpush1.bf16.xpose.msra.mxu0 %v772
        %902 = vmatprep.subr.bf16.mxu0 %v775
        %903 = vmatpush1.bf16.xpose.msra.mxu0 %v774
        %904 = vmatprep.subr.bf16.mxu0 %v777
        %905 = vmatpush1.bf16.xpose.msra.mxu0 %v776
        %906 = vmatprep.subr.bf16.mxu0 %v779
        %907 = vmatpush1.bf16.xpose.msra.mxu0 %v778
        %908 = vmatprep.subr.bf16.mxu0 %v781
        %909 = vmatpush1.bf16.xpose.msra.mxu0 %v780
        %910 = vmatprep.subr.bf16.mxu0 %v783
        %911 = vmatpush1.bf16.xpose.msra.mxu0 %v782
        %912 = vmatprep.subr.bf16.mxu0 %v785
        %913 = vmatpush1.bf16.xpose.msra.mxu0 %v784
        %914 = vmatprep.subr.bf16.mxu0 %v787
        %915 = vmatpush1.bf16.xpose.msra.mxu0 %v786
        %916 = vmatprep.subr.bf16.mxu0 %v789
        %917 = vmatpush1.bf16.xpose.msra.mxu0 %v788
        %918 = vmatprep.subr.bf16.mxu0 %v791
        %919 = vmatpush1.bf16.xpose.msra.mxu0 %v790
        %920 = vmatprep.subr.bf16.mxu0 %v793
        %921 = vmatpush1.bf16.xpose.msra.mxu0 %v792
        %922 = vmatprep.subr.bf16.mxu0 %v795
        %923 = vmatpush1.bf16.xpose.msra.mxu0 %v794
        %924 = vmatprep.subr.bf16.mxu0 %v797
        %925 = vmatpush1.bf16.xpose.msra.mxu0 %v796
        %926 = vmatprep.subr.bf16.mxu0 %v799
        %927 = vmatpush1.bf16.xpose.msra.mxu0 %v798
        %928 = vmatprep.subr.bf16.mxu0 %v801
        %929 = vmatpush1.bf16.xpose.msra.mxu0 %v800
        %930 = vmatprep.subr.bf16.mxu0 %v803
        %931 = vmatpush1.bf16.xpose.msra.mxu0 %v802
        %932 = vmatprep.mubr.bf16.mxu0 %v549
        %933 = vmatmul.mubr.bf16.gmra.mrb[0].mxu0 %v548
        %v934 = vpop.f32.mrb[0].mxu0
        %v935 = vadd.f32 %v483, %v934
        %v936 = vpop.f32.mrb[0].mxu0
        %v937 = vadd.f32 %v487, %v936
        %v938 = vpop.f32.mrb[0].mxu0
        %v939 = vadd.f32 %v483, %v938
        %v940 = vpop.f32.mrb[0].mxu0
        %v941 = vadd.f32 %v487, %v940
        %942 = vmatprep.mubr.bf16.mxu0 %v551
        %943 = vmatmul.mubr.bf16.gmra.mrb[0].mxu0 %v550
        %v944 = vpop.f32.mrb[0].mxu0
        %v945 = vadd.f32 %v483, %v944
        %v946 = vpop.f32.mrb[0].mxu0
        %v947 = vadd.f32 %v487, %v946
        %v948 = vpop.f32.mrb[0].mxu0
        %v949 = vadd.f32 %v483, %v948
        %v950 = vpop.f32.mrb[0].mxu0
        %v951 = vadd.f32 %v487, %v950
        %952 = vmatprep.mubr.bf16.mxu0 %v553
        %953 = vmatmul.mubr.bf16.gmra.mrb[0].mxu0 %v552
        %v954 = vpop.f32.mrb[0].mxu0
        %v955 = vadd.f32 %v483, %v954
        %v956 = vpop.f32.mrb[0].mxu0
        %v957 = vadd.f32 %v487, %v956
        %v958 = vpop.f32.mrb[0].mxu0
        %v959 = vadd.f32 %v483, %v958
        %v960 = vpop.f32.mrb[0].mxu0
        %v961 = vadd.f32 %v487, %v960
        %962 = vmatprep.mubr.bf16.mxu0 %v555
        %963 = vmatmul.mubr.bf16.gmra.mrb[0].mxu0 %v554
        %v964 = vpop.f32.mrb[0].mxu0
        %v965 = vadd.f32 %v483, %v964
        %v966 = vpop.f32.mrb[0].mxu0
        %v967 = vadd.f32 %v487, %v966
        %v968 = vpop.f32.mrb[0].mxu0
        %v969 = vadd.f32 %v483, %v968
        %v970 = vpop.f32.mrb[0].mxu0
        %v971 = vadd.f32 %v487, %v970
        %972 = vmatprep.mubr.bf16.mxu0 %v557
        %973 = vmatmul.mubr.bf16.gmra.mrb[0].mxu0 %v556
        %v974 = vpop.f32.mrb[0].mxu0
        %v975 = vadd.f32 %v483, %v974
        %v976 = vpop.f32.mrb[0].mxu0
        %v977 = vadd.f32 %v487, %v976
        %v978 = vpop.f32.mrb[0].mxu0
        %v979 = vadd.f32 %v483, %v978
        %v980 = vpop.f32.mrb[0].mxu0
        %v981 = vadd.f32 %v487, %v980
        %982 = vmatprep.mubr.bf16.mxu0 %v559
        %983 = vmatmul.mubr.bf16.gmra.mrb[0].mxu0 %v558
        %v984 = vpop.f32.mrb[0].mxu0
        %v985 = vadd.f32 %v483, %v984
        %v986 = vpop.f32.mrb[0].mxu0
        %v987 = vadd.f32 %v487, %v986
        %v988 = vpop.f32.mrb[0].mxu0
        %v989 = vadd.f32 %v483, %v988
        %v990 = vpop.f32.mrb[0].mxu0
        %v991 = vadd.f32 %v487, %v990
        %992 = vmatprep.mubr.bf16.mxu0 %v561
        %993 = vmatmul.mubr.bf16.gmra.mrb[0].mxu0 %v560
        %v994 = vpop.f32.mrb[0].mxu0
        %v995 = vadd.f32 %v483, %v994
        %v996 = vpop.f32.mrb[0].mxu0
        %v997 = vadd.f32 %v487, %v996
        %v998 = vpop.f32.mrb[0].mxu0
        %v999 = vadd.f32 %v483, %v998
        %v1000 = vpop.f32.mrb[0].mxu0
        %v1001 = vadd.f32 %v487, %v1000
        %1002 = vmatprep.mubr.bf16.mxu0 %v563
        %1003 = vmatmul.mubr.bf16.gmra.mrb[0].mxu0 %v562
        %v1004 = vpop.f32.mrb[0].mxu0
        %v1005 = vadd.f32 %v483, %v1004
        %v1006 = vpop.f32.mrb[0].mxu0
        %v1007 = vadd.f32 %v487, %v1006
        %v1008 = vpop.f32.mrb[0].mxu0
        %v1009 = vadd.f32 %v483, %v1008
        %v1010 = vpop.f32.mrb[0].mxu0
        %v1011 = vadd.f32 %v487, %v1010
        %1012 = vdwg.mxu0
        %1013 = vmatprep.subr.bf16.mxu0 %v805
        %1014 = vmatpush1.bf16.xpose.msra.mxu0 %v804
        %1015 = vmatprep.subr.bf16.mxu0 %v807
        %1016 = vmatpush1.bf16.xpose.msra.mxu0 %v806
        %1017 = vmatprep.subr.bf16.mxu0 %v809
        %1018 = vmatpush1.bf16.xpose.msra.mxu0 %v808
        %1019 = vmatprep.subr.bf16.mxu0 %v811
        %1020 = vmatpush1.bf16.xpose.msra.mxu0 %v810
        %1021 = vmatprep.subr.bf16.mxu0 %v813
        %1022 = vmatpush1.bf16.xpose.msra.mxu0 %v812
        %1023 = vmatprep.subr.bf16.mxu0 %v815
        %1024 = vmatpush1.bf16.xpose.msra.mxu0 %v814
        %1025 = vmatprep.subr.bf16.mxu0 %v817
        %1026 = vmatpush1.bf16.xpose.msra.mxu0 %v816
        %1027 = vmatprep.subr.bf16.mxu0 %v819
        %1028 = vmatpush1.bf16.xpose.msra.mxu0 %v818
        %1029 = vmatprep.subr.bf16.mxu0 %v821
        %1030 = vmatpush1.bf16.xpose.msra.mxu0 %v820
        %1031 = vmatprep.subr.bf16.mxu0 %v823
        %1032 = vmatpush1.bf16.xpose.msra.mxu0 %v822
        %1033 = vmatprep.subr.bf16.mxu0 %v825
        %1034 = vmatpush1.bf16.xpose.msra.mxu0 %v824
        %1035 = vmatprep.subr.bf16.mxu0 %v827
        %1036 = vmatpush1.bf16.xpose.msra.mxu0 %v826
        %1037 = vmatprep.subr.bf16.mxu0 %v829
        %1038 = vmatpush1.bf16.xpose.msra.mxu0 %v828
        %1039 = vmatprep.subr.bf16.mxu0 %v831
        %1040 = vmatpush1.bf16.xpose.msra.mxu0 %v830
        %1041 = vmatprep.subr.bf16.mxu0 %v833
        %1042 = vmatpush1.bf16.xpose.msra.mxu0 %v832
        %1043 = vmatprep.subr.bf16.mxu0 %v835
        %1044 = vmatpush1.bf16.xpose.msra.mxu0 %v834
        %1045 = vmatprep.mubr.bf16.mxu0 %v549
        %1046 = vmatmul.mubr.bf16.gmra.mrb[0].mxu0 %v548
        %v1047 = vpop.f32.mrb[0].mxu0
        %v1048 = vadd.f32 %v491, %v1047
        %v1049 = vpop.f32.mrb[0].mxu0
        %v1050 = vadd.f32 %v495, %v1049
        %v1051 = vpop.f32.mrb[0].mxu0
        %v1052 = vadd.f32 %v491, %v1051
        %v1053 = vpop.f32.mrb[0].mxu0
        %v1054 = vadd.f32 %v495, %v1053
        %1055 = vmatprep.mubr.bf16.mxu0 %v551
        %1056 = vmatmul.mubr.bf16.gmra.mrb[0].mxu0 %v550
        %v1057 = vpop.f32.mrb[0].mxu0
        %v1058 = vadd.f32 %v491, %v1057
        %v1059 = vpop.f32.mrb[0].mxu0
        %v1060 = vadd.f32 %v495, %v1059
        %v1061 = vpop.f32.mrb[0].mxu0
        %v1062 = vadd.f32 %v491, %v1061
        %v1063 = vpop.f32.mrb[0].mxu0
        %v1064 = vadd.f32 %v495, %v1063
        %1065 = vmatprep.mubr.bf16.mxu0 %v553
        %1066 = vmatmul.mubr.bf16.gmra.mrb[0].mxu0 %v552
        %v1067 = vpop.f32.mrb[0].mxu0
        %v1068 = vadd.f32 %v491, %v1067
        %v1069 = vpop.f32.mrb[0].mxu0
        %v1070 = vadd.f32 %v495, %v1069
        %v1071 = vpop.f32.mrb[0].mxu0
        %v1072 = vadd.f32 %v491, %v1071
        %v1073 = vpop.f32.mrb[0].mxu0
        %v1074 = vadd.f32 %v495, %v1073
        %1075 = vmatprep.mubr.bf16.mxu0 %v555
        %1076 = vmatmul.mubr.bf16.gmra.mrb[0].mxu0 %v554
        %v1077 = vpop.f32.mrb[0].mxu0
        %v1078 = vadd.f32 %v491, %v1077
        %v1079 = vpop.f32.mrb[0].mxu0
        %v1080 = vadd.f32 %v495, %v1079
        %v1081 = vpop.f32.mrb[0].mxu0
        %v1082 = vadd.f32 %v491, %v1081
        %v1083 = vpop.f32.mrb[0].mxu0
        %v1084 = vadd.f32 %v495, %v1083
        %1085 = vmatprep.mubr.bf16.mxu0 %v557
        %1086 = vmatmul.mubr.bf16.gmra.mrb[0].mxu0 %v556
        %v1087 = vpop.f32.mrb[0].mxu0
        %v1088 = vadd.f32 %v491, %v1087
        %v1089 = vpop.f32.mrb[0].mxu0
        %v1090 = vadd.f32 %v495, %v1089
        %v1091 = vpop.f32.mrb[0].mxu0
        %v1092 = vadd.f32 %v491, %v1091
        %v1093 = vpop.f32.mrb[0].mxu0
        %v1094 = vadd.f32 %v495, %v1093
        %1095 = vmatprep.mubr.bf16.mxu0 %v559
        %1096 = vmatmul.mubr.bf16.gmra.mrb[0].mxu0 %v558
        %v1097 = vpop.f32.mrb[0].mxu0
        %v1098 = vadd.f32 %v491, %v1097
        %v1099 = vpop.f32.mrb[0].mxu0
        %v1100 = vadd.f32 %v495, %v1099
        %v1101 = vpop.f32.mrb[0].mxu0
        %v1102 = vadd.f32 %v491, %v1101
        %v1103 = vpop.f32.mrb[0].mxu0
        %v1104 = vadd.f32 %v495, %v1103
        %1105 = vmatprep.mubr.bf16.mxu0 %v561
        %1106 = vmatmul.mubr.bf16.gmra.mrb[0].mxu0 %v560
        %v1107 = vpop.f32.mrb[0].mxu0
        %v1108 = vadd.f32 %v491, %v1107
        %v1109 = vpop.f32.mrb[0].mxu0
        %v1110 = vadd.f32 %v495, %v1109
        %v1111 = vpop.f32.mrb[0].mxu0
        %v1112 = vadd.f32 %v491, %v1111
        %v1113 = vpop.f32.mrb[0].mxu0
        %v1114 = vadd.f32 %v495, %v1113
        %1115 = vmatprep.mubr.bf16.mxu0 %v563
        %1116 = vmatmul.mubr.bf16.gmra.mrb[0].mxu0 %v562
        %v1117 = vpop.f32.mrb[0].mxu0
        %v1118 = vadd.f32 %v491, %v1117
        %v1119 = vpop.f32.mrb[0].mxu0
        %v1120 = vadd.f32 %v495, %v1119
        %v1121 = vpop.f32.mrb[0].mxu0
        %v1122 = vadd.f32 %v491, %v1121
        %v1123 = vpop.f32.mrb[0].mxu0
        %v1124 = vadd.f32 %v495, %v1123
        %1125 = vdwg.mxu0
        %v1126 = vmul.f32 %v935, 0.5
        %v1127 = vmul.f32 %v937, 0.5
        %v1128 = vmul.f32 %v1048, 0.5
        %v1129 = vmul.f32 %v1050, 0.5
        %v1130 = vmul.f32 %v939, 0.5
        %v1131 = vmul.f32 %v941, 0.5
        %v1132 = vmul.f32 %v1052, 0.5
        %v1133 = vmul.f32 %v1054, 0.5
        %v1134 = vmul.f32 %v945, 0.5
        %v1135 = vmul.f32 %v947, 0.5
        %v1136 = vmul.f32 %v1058, 0.5
        %v1137 = vmul.f32 %v1060, 0.5
        %v1138 = vmul.f32 %v949, 0.5
        %v1139 = vmul.f32 %v951, 0.5
        %v1140 = vmul.f32 %v1062, 0.5
        %v1141 = vmul.f32 %v1064, 0.5
        %v1142 = vmul.f32 %v955, 0.5
        %v1143 = vmul.f32 %v957, 0.5
        %v1144 = vmul.f32 %v1068, 0.5
        %v1145 = vmul.f32 %v1070, 0.5
        %v1146 = vmul.f32 %v959, 0.5
        %v1147 = vmul.f32 %v961, 0.5
        %v1148 = vmul.f32 %v1072, 0.5
        %v1149 = vmul.f32 %v1074, 0.5
        %v1150 = vmul.f32 %v965, 0.5
        %v1151 = vmul.f32 %v967, 0.5
        %v1152 = vmul.f32 %v1078, 0.5
        %v1153 = vmul.f32 %v1080, 0.5
        %v1154 = vmul.f32 %v969, 0.5
        %v1155 = vmul.f32 %v971, 0.5
        %v1156 = vmul.f32 %v1082, 0.5
        %v1157 = vmul.f32 %v1084, 0.5
        %v1158 = vmul.f32 %v975, 0.5
        %v1159 = vmul.f32 %v977, 0.5
        %v1160 = vmul.f32 %v1088, 0.5
        %v1161 = vmul.f32 %v1090, 0.5
        %v1162 = vmul.f32 %v979, 0.5
        %v1163 = vmul.f32 %v981, 0.5
        %v1164 = vmul.f32 %v1092, 0.5
        %v1165 = vmul.f32 %v1094, 0.5
        %v1166 = vmul.f32 %v985, 0.5
        %v1167 = vmul.f32 %v987, 0.5
        %v1168 = vmul.f32 %v1098, 0.5
        %v1169 = vmul.f32 %v1100, 0.5
        %v1170 = vmul.f32 %v989, 0.5
        %v1171 = vmul.f32 %v991, 0.5
        %v1172 = vmul.f32 %v1102, 0.5
        %v1173 = vmul.f32 %v1104, 0.5
        %v1174 = vmul.f32 %v995, 0.5
        %v1175 = vmul.f32 %v997, 0.5
        %v1176 = vmul.f32 %v1108, 0.5
        %v1177 = vmul.f32 %v1110, 0.5
        %v1178 = vmul.f32 %v999, 0.5
        %v1179 = vmul.f32 %v1001, 0.5
        %v1180 = vmul.f32 %v1112, 0.5
        %v1181 = vmul.f32 %v1114, 0.5
        %v1182 = vmul.f32 %v1005, 0.5
        %v1183 = vmul.f32 %v1007, 0.5
        %v1184 = vmul.f32 %v1118, 0.5
        %v1185 = vmul.f32 %v1120, 0.5
        %v1186 = vmul.f32 %v1009, 0.5
        %v1187 = vmul.f32 %v1011, 0.5
        %v1188 = vmul.f32 %v1122, 0.5
        %v1189 = vmul.f32 %v1124, 0.5
        %v1190 = vmul.f32 %v935, %v935
        %v1191 = vmul.f32 %v937, %v937
        %v1192 = vmul.f32 %v1048, %v1048
        %v1193 = vmul.f32 %v1050, %v1050
        %v1194 = vmul.f32 %v939, %v939
        %v1195 = vmul.f32 %v941, %v941
        %v1196 = vmul.f32 %v1052, %v1052
        %v1197 = vmul.f32 %v1054, %v1054
        %v1198 = vmul.f32 %v945, %v945
        %v1199 = vmul.f32 %v947, %v947
        %v1200 = vmul.f32 %v1058, %v1058
        %v1201 = vmul.f32 %v1060, %v1060
        %v1202 = vmul.f32 %v949, %v949
        %v1203 = vmul.f32 %v951, %v951
        %v1204 = vmul.f32 %v1062, %v1062
        %v1205 = vmul.f32 %v1064, %v1064
        %v1206 = vmul.f32 %v955, %v955
        %v1207 = vmul.f32 %v957, %v957
        %v1208 = vmul.f32 %v1068, %v1068
        %v1209 = vmul.f32 %v1070, %v1070
        %v1210 = vmul.f32 %v959, %v959
        %v1211 = vmul.f32 %v961, %v961
        %v1212 = vmul.f32 %v1072, %v1072
        %v1213 = vmul.f32 %v1074, %v1074
        %v1214 = vmul.f32 %v965, %v965
        %v1215 = vmul.f32 %v967, %v967
        %v1216 = vmul.f32 %v1078, %v1078
        %v1217 = vmul.f32 %v1080, %v1080
        %v1218 = vmul.f32 %v969, %v969
        %v1219 = vmul.f32 %v971, %v971
        %v1220 = vmul.f32 %v1082, %v1082
        %v1221 = vmul.f32 %v1084, %v1084
        %v1222 = vmul.f32 %v975, %v975
        %v1223 = vmul.f32 %v977, %v977
        %v1224 = vmul.f32 %v1088, %v1088
        %v1225 = vmul.f32 %v1090, %v1090
        %v1226 = vmul.f32 %v979, %v979
        %v1227 = vmul.f32 %v981, %v981
        %v1228 = vmul.f32 %v1092, %v1092
        %v1229 = vmul.f32 %v1094, %v1094
        %v1230 = vmul.f32 %v985, %v985
        %v1231 = vmul.f32 %v987, %v987
        %v1232 = vmul.f32 %v1098, %v1098
        %v1233 = vmul.f32 %v1100, %v1100
        %v1234 = vmul.f32 %v989, %v989
        %v1235 = vmul.f32 %v991, %v991
        %v1236 = vmul.f32 %v1102, %v1102
        %v1237 = vmul.f32 %v1104, %v1104
        %v1238 = vmul.f32 %v995, %v995
        %v1239 = vmul.f32 %v997, %v997
        %v1240 = vmul.f32 %v1108, %v1108
        %v1241 = vmul.f32 %v1110, %v1110
        %v1242 = vmul.f32 %v999, %v999
        %v1243 = vmul.f32 %v1001, %v1001
        %v1244 = vmul.f32 %v1112, %v1112
        %v1245 = vmul.f32 %v1114, %v1114
        %v1246 = vmul.f32 %v1005, %v1005
        %v1247 = vmul.f32 %v1007, %v1007
        %v1248 = vmul.f32 %v1118, %v1118
        %v1249 = vmul.f32 %v1120, %v1120
        %v1250 = vmul.f32 %v1009, %v1009
        %v1251 = vmul.f32 %v1011, %v1011
        %v1252 = vmul.f32 %v1122, %v1122
        %v1253 = vmul.f32 %v1124, %v1124
        %v1254 = vmul.f32 %v1190, %v935
        %v1255 = vmul.f32 %v1191, %v937
        %v1256 = vmul.f32 %v1192, %v1048
        %v1257 = vmul.f32 %v1193, %v1050
        %v1258 = vmul.f32 %v1194, %v939
        %v1259 = vmul.f32 %v1195, %v941
        %v1260 = vmul.f32 %v1196, %v1052
        %v1261 = vmul.f32 %v1197, %v1054
        %v1262 = vmul.f32 %v1198, %v945
        %v1263 = vmul.f32 %v1199, %v947
        %v1264 = vmul.f32 %v1200, %v1058
        %v1265 = vmul.f32 %v1201, %v1060
        %v1266 = vmul.f32 %v1202, %v949
        %v1267 = vmul.f32 %v1203, %v951
        %v1268 = vmul.f32 %v1204, %v1062
        %v1269 = vmul.f32 %v1205, %v1064
        %v1270 = vmul.f32 %v1206, %v955
        %v1271 = vmul.f32 %v1207, %v957
        %v1272 = vmul.f32 %v1208, %v1068
        %v1273 = vmul.f32 %v1209, %v1070
        %v1274 = vmul.f32 %v1210, %v959
        %v1275 = vmul.f32 %v1211, %v961
        %v1276 = vmul.f32 %v1212, %v1072
        %v1277 = vmul.f32 %v1213, %v1074
        %v1278 = vmul.f32 %v1214, %v965
        %v1279 = vmul.f32 %v1215, %v967
        %v1280 = vmul.f32 %v1216, %v1078
        %v1281 = vmul.f32 %v1217, %v1080
        %v1282 = vmul.f32 %v1218, %v969
        %v1283 = vmul.f32 %v1219, %v971
        %v1284 = vmul.f32 %v1220, %v1082
        %v1285 = vmul.f32 %v1221, %v1084
        %v1286 = vmul.f32 %v1222, %v975
        %v1287 = vmul.f32 %v1223, %v977
        %v1288 = vmul.f32 %v1224, %v1088
        %v1289 = vmul.f32 %v1225, %v1090
        %v1290 = vmul.f32 %v1226, %v979
        %v1291 = vmul.f32 %v1227, %v981
        %v1292 = vmul.f32 %v1228, %v1092
        %v1293 = vmul.f32 %v1229, %v1094
        %v1294 = vmul.f32 %v1230, %v985
        %v1295 = vmul.f32 %v1231, %v987
        %v1296 = vmul.f32 %v1232, %v1098
        %v1297 = vmul.f32 %v1233, %v1100
        %v1298 = vmul.f32 %v1234, %v989
        %v1299 = vmul.f32 %v1235, %v991
        %v1300 = vmul.f32 %v1236, %v1102
        %v1301 = vmul.f32 %v1237, %v1104
        %v1302 = vmul.f32 %v1238, %v995
        %v1303 = vmul.f32 %v1239, %v997
        %v1304 = vmul.f32 %v1240, %v1108
        %v1305 = vmul.f32 %v1241, %v1110
        %v1306 = vmul.f32 %v1242, %v999
        %v1307 = vmul.f32 %v1243, %v1001
        %v1308 = vmul.f32 %v1244, %v1112
        %v1309 = vmul.f32 %v1245, %v1114
        %v1310 = vmul.f32 %v1246, %v1005
        %v1311 = vmul.f32 %v1247, %v1007
        %v1312 = vmul.f32 %v1248, %v1118
        %v1313 = vmul.f32 %v1249, %v1120
        %v1314 = vmul.f32 %v1250, %v1009
        %v1315 = vmul.f32 %v1251, %v1011
        %v1316 = vmul.f32 %v1252, %v1122
        %v1317 = vmul.f32 %v1253, %v1124
        %v1318 = vmul.f32 %v1254, 0.044715
        %v1319 = vmul.f32 %v1255, 0.044715
        %v1320 = vmul.f32 %v1256, 0.044715
        %v1321 = vmul.f32 %v1257, 0.044715
        %v1322 = vmul.f32 %v1258, 0.044715
        %v1323 = vmul.f32 %v1259, 0.044715
        %v1324 = vmul.f32 %v1260, 0.044715
        %v1325 = vmul.f32 %v1261, 0.044715
        %v1326 = vmul.f32 %v1262, 0.044715
        %v1327 = vmul.f32 %v1263, 0.044715
        %v1328 = vmul.f32 %v1264, 0.044715
        %v1329 = vmul.f32 %v1265, 0.044715
        %v1330 = vmul.f32 %v1266, 0.044715
        %v1331 = vmul.f32 %v1267, 0.044715
        %v1332 = vmul.f32 %v1268, 0.044715
        %v1333 = vmul.f32 %v1269, 0.044715
        %v1334 = vmul.f32 %v1270, 0.044715
        %v1335 = vmul.f32 %v1271, 0.044715
        %v1336 = vmul.f32 %v1272, 0.044715
        %v1337 = vmul.f32 %v1273, 0.044715
        %v1338 = vmul.f32 %v1274, 0.044715
        %v1339 = vmul.f32 %v1275, 0.044715
        %v1340 = vmul.f32 %v1276, 0.044715
        %v1341 = vmul.f32 %v1277, 0.044715
        %v1342 = vmul.f32 %v1278, 0.044715
        %v1343 = vmul.f32 %v1279, 0.044715
        %v1344 = vmul.f32 %v1280, 0.044715
        %v1345 = vmul.f32 %v1281, 0.044715
        %v1346 = vmul.f32 %v1282, 0.044715
        %v1347 = vmul.f32 %v1283, 0.044715
        %v1348 = vmul.f32 %v1284, 0.044715
        %v1349 = vmul.f32 %v1285, 0.044715
        %v1350 = vmul.f32 %v1286, 0.044715
        %v1351 = vmul.f32 %v1287, 0.044715
        %v1352 = vmul.f32 %v1288, 0.044715
        %v1353 = vmul.f32 %v1289, 0.044715
        %v1354 = vmul.f32 %v1290, 0.044715
        %v1355 = vmul.f32 %v1291, 0.044715
        %v1356 = vmul.f32 %v1292, 0.044715
        %v1357 = vmul.f32 %v1293, 0.044715
        %v1358 = vmul.f32 %v1294, 0.044715
        %v1359 = vmul.f32 %v1295, 0.044715
        %v1360 = vmul.f32 %v1296, 0.044715
        %v1361 = vmul.f32 %v1297, 0.044715
        %v1362 = vmul.f32 %v1298, 0.044715
        %v1363 = vmul.f32 %v1299, 0.044715
        %v1364 = vmul.f32 %v1300, 0.044715
        %v1365 = vmul.f32 %v1301, 0.044715
        %v1366 = vmul.f32 %v1302, 0.044715
        %v1367 = vmul.f32 %v1303, 0.044715
        %v1368 = vmul.f32 %v1304, 0.044715
        %v1369 = vmul.f32 %v1305, 0.044715
        %v1370 = vmul.f32 %v1306, 0.044715
        %v1371 = vmul.f32 %v1307, 0.044715
        %v1372 = vmul.f32 %v1308, 0.044715
        %v1373 = vmul.f32 %v1309, 0.044715
        %v1374 = vmul.f32 %v1310, 0.044715
        %v1375 = vmul.f32 %v1311, 0.044715
        %v1376 = vmul.f32 %v1312, 0.044715
        %v1377 = vmul.f32 %v1313, 0.044715
        %v1378 = vmul.f32 %v1314, 0.044715
        %v1379 = vmul.f32 %v1315, 0.044715
        %v1380 = vmul.f32 %v1316, 0.044715
        %v1381 = vmul.f32 %v1317, 0.044715
        %v1382 = vadd.f32 %v935, %v1318
        %v1383 = vadd.f32 %v937, %v1319
        %v1384 = vadd.f32 %v1048, %v1320
        %v1385 = vadd.f32 %v1050, %v1321
        %v1386 = vadd.f32 %v939, %v1322
        %v1387 = vadd.f32 %v941, %v1323
        %v1388 = vadd.f32 %v1052, %v1324
        %v1389 = vadd.f32 %v1054, %v1325
        %v1390 = vadd.f32 %v945, %v1326
        %v1391 = vadd.f32 %v947, %v1327
        %v1392 = vadd.f32 %v1058, %v1328
        %v1393 = vadd.f32 %v1060, %v1329
        %v1394 = vadd.f32 %v949, %v1330
        %v1395 = vadd.f32 %v951, %v1331
        %v1396 = vadd.f32 %v1062, %v1332
        %v1397 = vadd.f32 %v1064, %v1333
        %v1398 = vadd.f32 %v955, %v1334
        %v1399 = vadd.f32 %v957, %v1335
        %v1400 = vadd.f32 %v1068, %v1336
        %v1401 = vadd.f32 %v1070, %v1337
        %v1402 = vadd.f32 %v959, %v1338
        %v1403 = vadd.f32 %v961, %v1339
        %v1404 = vadd.f32 %v1072, %v1340
        %v1405 = vadd.f32 %v1074, %v1341
        %v1406 = vadd.f32 %v965, %v1342
        %v1407 = vadd.f32 %v967, %v1343
        %v1408 = vadd.f32 %v1078, %v1344
        %v1409 = vadd.f32 %v1080, %v1345
        %v1410 = vadd.f32 %v969, %v1346
        %v1411 = vadd.f32 %v971, %v1347
        %v1412 = vadd.f32 %v1082, %v1348
        %v1413 = vadd.f32 %v1084, %v1349
        %v1414 = vadd.f32 %v975, %v1350
        %v1415 = vadd.f32 %v977, %v1351
        %v1416 = vadd.f32 %v1088, %v1352
        %v1417 = vadd.f32 %v1090, %v1353
        %v1418 = vadd.f32 %v979, %v1354
        %v1419 = vadd.f32 %v981, %v1355
        %v1420 = vadd.f32 %v1092, %v1356
        %v1421 = vadd.f32 %v1094, %v1357
        %v1422 = vadd.f32 %v985, %v1358
        %v1423 = vadd.f32 %v987, %v1359
        %v1424 = vadd.f32 %v1098, %v1360
        %v1425 = vadd.f32 %v1100, %v1361
        %v1426 = vadd.f32 %v989, %v1362
        %v1427 = vadd.f32 %v991, %v1363
        %v1428 = vadd.f32 %v1102, %v1364
        %v1429 = vadd.f32 %v1104, %v1365
        %v1430 = vadd.f32 %v995, %v1366
        %v1431 = vadd.f32 %v997, %v1367
        %v1432 = vadd.f32 %v1108, %v1368
        %v1433 = vadd.f32 %v1110, %v1369
        %v1434 = vadd.f32 %v999, %v1370
        %v1435 = vadd.f32 %v1001, %v1371
        %v1436 = vadd.f32 %v1112, %v1372
        %v1437 = vadd.f32 %v1114, %v1373
        %v1438 = vadd.f32 %v1005, %v1374
        %v1439 = vadd.f32 %v1007, %v1375
        %v1440 = vadd.f32 %v1118, %v1376
        %v1441 = vadd.f32 %v1120, %v1377
        %v1442 = vadd.f32 %v1009, %v1378
        %v1443 = vadd.f32 %v1011, %v1379
        %v1444 = vadd.f32 %v1122, %v1380
        %v1445 = vadd.f32 %v1124, %v1381
        %v1446 = vmul.f32 %v1382, 0.7978846
        %v1447 = vmul.f32 %v1383, 0.7978846
        %v1448 = vmul.f32 %v1384, 0.7978846
        %v1449 = vmul.f32 %v1385, 0.7978846
        %v1450 = vmul.f32 %v1386, 0.7978846
        %v1451 = vmul.f32 %v1387, 0.7978846
        %v1452 = vmul.f32 %v1388, 0.7978846
        %v1453 = vmul.f32 %v1389, 0.7978846
        %v1454 = vmul.f32 %v1390, 0.7978846
        %v1455 = vmul.f32 %v1391, 0.7978846
        %v1456 = vmul.f32 %v1392, 0.7978846
        %v1457 = vmul.f32 %v1393, 0.7978846
        %v1458 = vmul.f32 %v1394, 0.7978846
        %v1459 = vmul.f32 %v1395, 0.7978846
        %v1460 = vmul.f32 %v1396, 0.7978846
        %v1461 = vmul.f32 %v1397, 0.7978846
        %v1462 = vmul.f32 %v1398, 0.7978846
        %v1463 = vmul.f32 %v1399, 0.7978846
        %v1464 = vmul.f32 %v1400, 0.7978846
        %v1465 = vmul.f32 %v1401, 0.7978846
        %v1466 = vmul.f32 %v1402, 0.7978846
        %v1467 = vmul.f32 %v1403, 0.7978846
        %v1468 = vmul.f32 %v1404, 0.7978846
        %v1469 = vmul.f32 %v1405, 0.7978846
        %v1470 = vmul.f32 %v1406, 0.7978846
        %v1471 = vmul.f32 %v1407, 0.7978846
        %v1472 = vmul.f32 %v1408, 0.7978846
        %v1473 = vmul.f32 %v1409, 0.7978846
        %v1474 = vmul.f32 %v1410, 0.7978846
        %v1475 = vmul.f32 %v1411, 0.7978846
        %v1476 = vmul.f32 %v1412, 0.7978846
        %v1477 = vmul.f32 %v1413, 0.7978846
        %v1478 = vmul.f32 %v1414, 0.7978846
        %v1479 = vmul.f32 %v1415, 0.7978846
        %v1480 = vmul.f32 %v1416, 0.7978846
        %v1481 = vmul.f32 %v1417, 0.7978846
        %v1482 = vmul.f32 %v1418, 0.7978846
        %v1483 = vmul.f32 %v1419, 0.7978846
        %v1484 = vmul.f32 %v1420, 0.7978846
        %v1485 = vmul.f32 %v1421, 0.7978846
        %v1486 = vmul.f32 %v1422, 0.7978846
        %v1487 = vmul.f32 %v1423, 0.7978846
        %v1488 = vmul.f32 %v1424, 0.7978846
        %v1489 = vmul.f32 %v1425, 0.7978846
        %v1490 = vmul.f32 %v1426, 0.7978846
        %v1491 = vmul.f32 %v1427, 0.7978846
        %v1492 = vmul.f32 %v1428, 0.7978846
        %v1493 = vmul.f32 %v1429, 0.7978846
        %v1494 = vmul.f32 %v1430, 0.7978846
        %v1495 = vmul.f32 %v1431, 0.7978846
        %v1496 = vmul.f32 %v1432, 0.7978846
        %v1497 = vmul.f32 %v1433, 0.7978846
        %v1498 = vmul.f32 %v1434, 0.7978846
        %v1499 = vmul.f32 %v1435, 0.7978846
        %v1500 = vmul.f32 %v1436, 0.7978846
        %v1501 = vmul.f32 %v1437, 0.7978846
        %v1502 = vmul.f32 %v1438, 0.7978846
        %v1503 = vmul.f32 %v1439, 0.7978846
        %v1504 = vmul.f32 %v1440, 0.7978846
        %v1505 = vmul.f32 %v1441, 0.7978846
        %v1506 = vmul.f32 %v1442, 0.7978846
        %v1507 = vmul.f32 %v1443, 0.7978846
        %v1508 = vmul.f32 %v1444, 0.7978846
        %v1509 = vmul.f32 %v1445, 0.7978846
        %v1510 = vtanh.pop %v1446
        %v1511 = vtanh.pop %v1447
        %v1512 = vtanh.pop %v1448
        %v1513 = vtanh.pop %v1449
        %v1514 = vtanh.pop %v1450
        %v1515 = vtanh.pop %v1451
        %v1516 = vtanh.pop %v1452
        %v1517 = vtanh.pop %v1453
        %v1518 = vtanh.pop %v1454
        %v1519 = vtanh.pop %v1455
        %v1520 = vtanh.pop %v1456
        %v1521 = vtanh.pop %v1457
        %v1522 = vtanh.pop %v1458
        %v1523 = vtanh.pop %v1459
        %v1524 = vtanh.pop %v1460
        %v1525 = vtanh.pop %v1461
        %v1526 = vtanh.pop %v1462
        %v1527 = vtanh.pop %v1463
        %v1528 = vtanh.pop %v1464
        %v1529 = vtanh.pop %v1465
        %v1530 = vtanh.pop %v1466
        %v1531 = vtanh.pop %v1467
        %v1532 = vtanh.pop %v1468
        %v1533 = vtanh.pop %v1469
        %v1534 = vtanh.pop %v1470
        %v1535 = vtanh.pop %v1471
        %v1536 = vtanh.pop %v1472
        %v1537 = vtanh.pop %v1473
        %v1538 = vtanh.pop %v1474
        %v1539 = vtanh.pop %v1475
        %v1540 = vtanh.pop %v1476
        %v1541 = vtanh.pop %v1477
        %v1542 = vtanh.pop %v1478
        %v1543 = vtanh.pop %v1479
        %v1544 = vtanh.pop %v1480
        %v1545 = vtanh.pop %v1481
        %v1546 = vtanh.pop %v1482
        %v1547 = vtanh.pop %v1483
        %v1548 = vtanh.pop %v1484
        %v1549 = vtanh.pop %v1485
        %v1550 = vtanh.pop %v1486
        %v1551 = vtanh.pop %v1487
        %v1552 = vtanh.pop %v1488
        %v1553 = vtanh.pop %v1489
        %v1554 = vtanh.pop %v1490
        %v1555 = vtanh.pop %v1491
        %v1556 = vtanh.pop %v1492
        %v1557 = vtanh.pop %v1493
        %v1558 = vtanh.pop %v1494
        %v1559 = vtanh.pop %v1495
        %v1560 = vtanh.pop %v1496
        %v1561 = vtanh.pop %v1497
        %v1562 = vtanh.pop %v1498
        %v1563 = vtanh.pop %v1499
        %v1564 = vtanh.pop %v1500
        %v1565 = vtanh.pop %v1501
        %v1566 = vtanh.pop %v1502
        %v1567 = vtanh.pop %v1503
        %v1568 = vtanh.pop %v1504
        %v1569 = vtanh.pop %v1505
        %v1570 = vtanh.pop %v1506
        %v1571 = vtanh.pop %v1507
        %v1572 = vtanh.pop %v1508
        %v1573 = vtanh.pop %v1509
        %v1574 = vadd.f32 %v1510, 1.0
        %v1575 = vadd.f32 %v1511, 1.0
        %v1576 = vadd.f32 %v1512, 1.0
        %v1577 = vadd.f32 %v1513, 1.0
        %v1578 = vadd.f32 %v1514, 1.0
        %v1579 = vadd.f32 %v1515, 1.0
        %v1580 = vadd.f32 %v1516, 1.0
        %v1581 = vadd.f32 %v1517, 1.0
        %v1582 = vadd.f32 %v1518, 1.0
        %v1583 = vadd.f32 %v1519, 1.0
        %v1584 = vadd.f32 %v1520, 1.0
        %v1585 = vadd.f32 %v1521, 1.0
        %v1586 = vadd.f32 %v1522, 1.0
        %v1587 = vadd.f32 %v1523, 1.0
        %v1588 = vadd.f32 %v1524, 1.0
        %v1589 = vadd.f32 %v1525, 1.0
        %v1590 = vadd.f32 %v1526, 1.0
        %v1591 = vadd.f32 %v1527, 1.0
        %v1592 = vadd.f32 %v1528, 1.0
        %v1593 = vadd.f32 %v1529, 1.0
        %v1594 = vadd.f32 %v1530, 1.0
        %v1595 = vadd.f32 %v1531, 1.0
        %v1596 = vadd.f32 %v1532, 1.0
        %v1597 = vadd.f32 %v1533, 1.0
        %v1598 = vadd.f32 %v1534, 1.0
        %v1599 = vadd.f32 %v1535, 1.0
        %v1600 = vadd.f32 %v1536, 1.0
        %v1601 = vadd.f32 %v1537, 1.0
        %v1602 = vadd.f32 %v1538, 1.0
        %v1603 = vadd.f32 %v1539, 1.0
        %v1604 = vadd.f32 %v1540, 1.0
        %v1605 = vadd.f32 %v1541, 1.0
        %v1606 = vadd.f32 %v1542, 1.0
        %v1607 = vadd.f32 %v1543, 1.0
        %v1608 = vadd.f32 %v1544, 1.0
        %v1609 = vadd.f32 %v1545, 1.0
        %v1610 = vadd.f32 %v1546, 1.0
        %v1611 = vadd.f32 %v1547, 1.0
        %v1612 = vadd.f32 %v1548, 1.0
        %v1613 = vadd.f32 %v1549, 1.0
        %v1614 = vadd.f32 %v1550, 1.0
        %v1615 = vadd.f32 %v1551, 1.0
        %v1616 = vadd.f32 %v1552, 1.0
        %v1617 = vadd.f32 %v1553, 1.0
        %v1618 = vadd.f32 %v1554, 1.0
        %v1619 = vadd.f32 %v1555, 1.0
        %v1620 = vadd.f32 %v1556, 1.0
        %v1621 = vadd.f32 %v1557, 1.0
        %v1622 = vadd.f32 %v1558, 1.0
        %v1623 = vadd.f32 %v1559, 1.0
        %v1624 = vadd.f32 %v1560, 1.0
        %v1625 = vadd.f32 %v1561, 1.0
        %v1626 = vadd.f32 %v1562, 1.0
        %v1627 = vadd.f32 %v1563, 1.0
        %v1628 = vadd.f32 %v1564, 1.0
        %v1629 = vadd.f32 %v1565, 1.0
        %v1630 = vadd.f32 %v1566, 1.0
        %v1631 = vadd.f32 %v1567, 1.0
        %v1632 = vadd.f32 %v1568, 1.0
        %v1633 = vadd.f32 %v1569, 1.0
        %v1634 = vadd.f32 %v1570, 1.0
        %v1635 = vadd.f32 %v1571, 1.0
        %v1636 = vadd.f32 %v1572, 1.0
        %v1637 = vadd.f32 %v1573, 1.0
        %v1638 = vmul.f32 %v1126, %v1574
        %v1639 = vmul.f32 %v1127, %v1575
        %v1640 = vmul.f32 %v1128, %v1576
        %v1641 = vmul.f32 %v1129, %v1577
        %v1642 = vmul.f32 %v1130, %v1578
        %v1643 = vmul.f32 %v1131, %v1579
        %v1644 = vmul.f32 %v1132, %v1580
        %v1645 = vmul.f32 %v1133, %v1581
        %v1646 = vmul.f32 %v1134, %v1582
        %v1647 = vmul.f32 %v1135, %v1583
        %v1648 = vmul.f32 %v1136, %v1584
        %v1649 = vmul.f32 %v1137, %v1585
        %v1650 = vmul.f32 %v1138, %v1586
        %v1651 = vmul.f32 %v1139, %v1587
        %v1652 = vmul.f32 %v1140, %v1588
        %v1653 = vmul.f32 %v1141, %v1589
        %v1654 = vmul.f32 %v1142, %v1590
        %v1655 = vmul.f32 %v1143, %v1591
        %v1656 = vmul.f32 %v1144, %v1592
        %v1657 = vmul.f32 %v1145, %v1593
        %v1658 = vmul.f32 %v1146, %v1594
        %v1659 = vmul.f32 %v1147, %v1595
        %v1660 = vmul.f32 %v1148, %v1596
        %v1661 = vmul.f32 %v1149, %v1597
        %v1662 = vmul.f32 %v1150, %v1598
        %v1663 = vmul.f32 %v1151, %v1599
        %v1664 = vmul.f32 %v1152, %v1600
        %v1665 = vmul.f32 %v1153, %v1601
        %v1666 = vmul.f32 %v1154, %v1602
        %v1667 = vmul.f32 %v1155, %v1603
        %v1668 = vmul.f32 %v1156, %v1604
        %v1669 = vmul.f32 %v1157, %v1605
        %v1670 = vmul.f32 %v1158, %v1606
        %v1671 = vmul.f32 %v1159, %v1607
        %v1672 = vmul.f32 %v1160, %v1608
        %v1673 = vmul.f32 %v1161, %v1609
        %v1674 = vmul.f32 %v1162, %v1610
        %v1675 = vmul.f32 %v1163, %v1611
        %v1676 = vmul.f32 %v1164, %v1612
        %v1677 = vmul.f32 %v1165, %v1613
        %v1678 = vmul.f32 %v1166, %v1614
        %v1679 = vmul.f32 %v1167, %v1615
        %v1680 = vmul.f32 %v1168, %v1616
        %v1681 = vmul.f32 %v1169, %v1617
        %v1682 = vmul.f32 %v1170, %v1618
        %v1683 = vmul.f32 %v1171, %v1619
        %v1684 = vmul.f32 %v1172, %v1620
        %v1685 = vmul.f32 %v1173, %v1621
        %v1686 = vmul.f32 %v1174, %v1622
        %v1687 = vmul.f32 %v1175, %v1623
        %v1688 = vmul.f32 %v1176, %v1624
        %v1689 = vmul.f32 %v1177, %v1625
        %v1690 = vmul.f32 %v1178, %v1626
        %v1691 = vmul.f32 %v1179, %v1627
        %v1692 = vmul.f32 %v1180, %v1628
        %v1693 = vmul.f32 %v1181, %v1629
        %v1694 = vmul.f32 %v1182, %v1630
        %v1695 = vmul.f32 %v1183, %v1631
        %v1696 = vmul.f32 %v1184, %v1632
        %v1697 = vmul.f32 %v1185, %v1633
        %v1698 = vmul.f32 %v1186, %v1634
        %v1699 = vmul.f32 %v1187, %v1635
        %v1700 = vmul.f32 %v1188, %v1636
        %v1701 = vmul.f32 %v1189, %v1637
        %v1702 = vld [vmem:[%s349] sm:$0xff]
        %v1703 = vld [vmem:[%s349 + $0x8] sm:$0xff]
        %v1704 = vld [vmem:[%s349 + $0x10] sm:$0xff]
        %v1705 = vld [vmem:[%s349 + $0x18] sm:$0xff]
        %v1706 = vld [vmem:[%s349 + $0x20] sm:$0xff]
        %v1707 = vld [vmem:[%s349 + $0x28] sm:$0xff]
        %v1708 = vld [vmem:[%s349 + $0x30] sm:$0xff]
        %v1709 = vld [vmem:[%s349 + $0x38] sm:$0xff]
        %v1710 = vld [vmem:[%s349 + $0x40] sm:$0xff]
        %v1711 = vld [vmem:[%s349 + $0x48] sm:$0xff]
        %v1712 = vld [vmem:[%s349 + $0x50] sm:$0xff]
        %v1713 = vld [vmem:[%s349 + $0x58] sm:$0xff]
        %v1714 = vld [vmem:[%s349 + $0x60] sm:$0xff]
        %v1715 = vld [vmem:[%s349 + $0x68] sm:$0xff]
        %v1716 = vld [vmem:[%s349 + $0x70] sm:$0xff]
        %v1717 = vld [vmem:[%s349 + $0x78] sm:$0xff]
        %v1718 = vld [vmem:[%s349 + $0x80] sm:$0xff]
        %v1719 = vld [vmem:[%s349 + $0x88] sm:$0xff]
        %v1720 = vld [vmem:[%s349 + $0x90] sm:$0xff]
        %v1721 = vld [vmem:[%s349 + $0x98] sm:$0xff]
        %v1722 = vld [vmem:[%s349 + $0xa0] sm:$0xff]
        %v1723 = vld [vmem:[%s349 + $0xa8] sm:$0xff]
        %v1724 = vld [vmem:[%s349 + $0xb0] sm:$0xff]
        %v1725 = vld [vmem:[%s349 + $0xb8] sm:$0xff]
        %v1726 = vld [vmem:[%s349 + $0xc0] sm:$0xff]
        %v1727 = vld [vmem:[%s349 + $0xc8] sm:$0xff]
        %v1728 = vld [vmem:[%s349 + $0xd0] sm:$0xff]
        %v1729 = vld [vmem:[%s349 + $0xd8] sm:$0xff]
        %v1730 = vld [vmem:[%s349 + $0xe0] sm:$0xff]
        %v1731 = vld [vmem:[%s349 + $0xe8] sm:$0xff]
        %v1732 = vld [vmem:[%s349 + $0xf0] sm:$0xff]
        %v1733 = vld [vmem:[%s349 + $0xf8] sm:$0xff]
        %v1734 = vpack.c.bf16 %v1642, %v1638
        %v1735 = vpack.c.bf16 %v1643, %v1639
        %v1736 = vpack.c.bf16 %v1644, %v1640
        %v1737 = vpack.c.bf16 %v1645, %v1641
        %v1738 = vpack.c.bf16 %v1650, %v1646
        %v1739 = vpack.c.bf16 %v1651, %v1647
        %v1740 = vpack.c.bf16 %v1652, %v1648
        %v1741 = vpack.c.bf16 %v1653, %v1649
        %v1742 = vpack.c.bf16 %v1658, %v1654
        %v1743 = vpack.c.bf16 %v1659, %v1655
        %v1744 = vpack.c.bf16 %v1660, %v1656
        %v1745 = vpack.c.bf16 %v1661, %v1657
        %v1746 = vpack.c.bf16 %v1666, %v1662
        %v1747 = vpack.c.bf16 %v1667, %v1663
        %v1748 = vpack.c.bf16 %v1668, %v1664
        %v1749 = vpack.c.bf16 %v1669, %v1665
        %v1750 = vpack.c.bf16 %v1674, %v1670
        %v1751 = vpack.c.bf16 %v1675, %v1671
        %v1752 = vpack.c.bf16 %v1676, %v1672
        %v1753 = vpack.c.bf16 %v1677, %v1673
        %v1754 = vpack.c.bf16 %v1682, %v1678
        %v1755 = vpack.c.bf16 %v1683, %v1679
        %v1756 = vpack.c.bf16 %v1684, %v1680
        %v1757 = vpack.c.bf16 %v1685, %v1681
        %v1758 = vpack.c.bf16 %v1690, %v1686
        %v1759 = vpack.c.bf16 %v1691, %v1687
        %v1760 = vpack.c.bf16 %v1692, %v1688
        %v1761 = vpack.c.bf16 %v1693, %v1689
        %v1762 = vpack.c.bf16 %v1698, %v1694
        %v1763 = vpack.c.bf16 %v1699, %v1695
        %v1764 = vpack.c.bf16 %v1700, %v1696
        %v1765 = vpack.c.bf16 %v1701, %v1697
        %v1766 = vld [vmem:[%s313] sm:$0xff]
        %v1767 = vld [vmem:[%s313 + $0x8] sm:$0xff]
        %v1768 = vld [vmem:[%s313 + $0x10] sm:$0xff]
        %v1769 = vld [vmem:[%s313 + $0x18] sm:$0xff]
        %v1770 = vld [vmem:[%s313 + $0x20] sm:$0xff]
        %v1771 = vld [vmem:[%s313 + $0x28] sm:$0xff]
        %v1772 = vld [vmem:[%s313 + $0x30] sm:$0xff]
        %v1773 = vld [vmem:[%s313 + $0x38] sm:$0xff]
        %v1774 = vld [vmem:[%s313 + $0x40] sm:$0xff]
        %v1775 = vld [vmem:[%s313 + $0x48] sm:$0xff]
        %v1776 = vld [vmem:[%s313 + $0x50] sm:$0xff]
        %v1777 = vld [vmem:[%s313 + $0x58] sm:$0xff]
        %v1778 = vld [vmem:[%s313 + $0x60] sm:$0xff]
        %v1779 = vld [vmem:[%s313 + $0x68] sm:$0xff]
        %v1780 = vld [vmem:[%s313 + $0x70] sm:$0xff]
        %v1781 = vld [vmem:[%s313 + $0x78] sm:$0xff]
        %v1782 = vld [vmem:[%s313 + $0x80] sm:$0xff]
        %v1783 = vld [vmem:[%s313 + $0x88] sm:$0xff]
        %v1784 = vld [vmem:[%s313 + $0x90] sm:$0xff]
        %v1785 = vld [vmem:[%s313 + $0x98] sm:$0xff]
        %v1786 = vld [vmem:[%s313 + $0xa0] sm:$0xff]
        %v1787 = vld [vmem:[%s313 + $0xa8] sm:$0xff]
        %v1788 = vld [vmem:[%s313 + $0xb0] sm:$0xff]
        %v1789 = vld [vmem:[%s313 + $0xb8] sm:$0xff]
        %v1790 = vld [vmem:[%s313 + $0xc0] sm:$0xff]
        %v1791 = vld [vmem:[%s313 + $0xc8] sm:$0xff]
        %v1792 = vld [vmem:[%s313 + $0xd0] sm:$0xff]
        %v1793 = vld [vmem:[%s313 + $0xd8] sm:$0xff]
        %v1794 = vld [vmem:[%s313 + $0xe0] sm:$0xff]
        %v1795 = vld [vmem:[%s313 + $0xe8] sm:$0xff]
        %v1796 = vld [vmem:[%s313 + $0xf0] sm:$0xff]
        %v1797 = vld [vmem:[%s313 + $0xf8] sm:$0xff]
        %v1798 = vld [vmem:[%s313 + $0x100] sm:$0xff]
        %v1799 = vld [vmem:[%s313 + $0x108] sm:$0xff]
        %v1800 = vld [vmem:[%s313 + $0x110] sm:$0xff]
        %v1801 = vld [vmem:[%s313 + $0x118] sm:$0xff]
        %v1802 = vld [vmem:[%s313 + $0x120] sm:$0xff]
        %v1803 = vld [vmem:[%s313 + $0x128] sm:$0xff]
        %v1804 = vld [vmem:[%s313 + $0x130] sm:$0xff]
        %v1805 = vld [vmem:[%s313 + $0x138] sm:$0xff]
        %v1806 = vld [vmem:[%s313 + $0x140] sm:$0xff]
        %v1807 = vld [vmem:[%s313 + $0x148] sm:$0xff]
        %v1808 = vld [vmem:[%s313 + $0x150] sm:$0xff]
        %v1809 = vld [vmem:[%s313 + $0x158] sm:$0xff]
        %v1810 = vld [vmem:[%s313 + $0x160] sm:$0xff]
        %v1811 = vld [vmem:[%s313 + $0x168] sm:$0xff]
        %v1812 = vld [vmem:[%s313 + $0x170] sm:$0xff]
        %v1813 = vld [vmem:[%s313 + $0x178] sm:$0xff]
        %v1814 = vld [vmem:[%s313 + $0x180] sm:$0xff]
        %v1815 = vld [vmem:[%s313 + $0x188] sm:$0xff]
        %v1816 = vld [vmem:[%s313 + $0x190] sm:$0xff]
        %v1817 = vld [vmem:[%s313 + $0x198] sm:$0xff]
        %v1818 = vld [vmem:[%s313 + $0x1a0] sm:$0xff]
        %v1819 = vld [vmem:[%s313 + $0x1a8] sm:$0xff]
        %v1820 = vld [vmem:[%s313 + $0x1b0] sm:$0xff]
        %v1821 = vld [vmem:[%s313 + $0x1b8] sm:$0xff]
        %v1822 = vld [vmem:[%s313 + $0x1c0] sm:$0xff]
        %v1823 = vld [vmem:[%s313 + $0x1c8] sm:$0xff]
        %v1824 = vld [vmem:[%s313 + $0x1d0] sm:$0xff]
        %v1825 = vld [vmem:[%s313 + $0x1d8] sm:$0xff]
        %v1826 = vld [vmem:[%s313 + $0x1e0] sm:$0xff]
        %v1827 = vld [vmem:[%s313 + $0x1e8] sm:$0xff]
        %v1828 = vld [vmem:[%s313 + $0x1f0] sm:$0xff]
        %v1829 = vld [vmem:[%s313 + $0x1f8] sm:$0xff]
        %v1894 = vunpack.c.l.b16 %v1766
        %v1895 = vunpack.c.h.b16 %v1766
        %v1896 = vunpack.c.l.b16 %v1767
        %v1897 = vunpack.c.h.b16 %v1767
        %v1898 = vunpack.c.l.b16 %v1768
        %v1899 = vunpack.c.h.b16 %v1768
        %v1900 = vunpack.c.l.b16 %v1769
        %v1901 = vunpack.c.h.b16 %v1769
        %v1902 = vunpack.c.l.b16 %v1770
        %v1903 = vunpack.c.h.b16 %v1770
        %v1904 = vunpack.c.l.b16 %v1771
        %v1905 = vunpack.c.h.b16 %v1771
        %v1906 = vunpack.c.l.b16 %v1772
        %v1907 = vunpack.c.h.b16 %v1772
        %v1908 = vunpack.c.l.b16 %v1773
        %v1909 = vunpack.c.h.b16 %v1773
        %v1910 = vunpack.c.l.b16 %v1774
        %v1911 = vunpack.c.h.b16 %v1774
        %v1912 = vunpack.c.l.b16 %v1775
        %v1913 = vunpack.c.h.b16 %v1775
        %v1914 = vunpack.c.l.b16 %v1776
        %v1915 = vunpack.c.h.b16 %v1776
        %v1916 = vunpack.c.l.b16 %v1777
        %v1917 = vunpack.c.h.b16 %v1777
        %v1918 = vunpack.c.l.b16 %v1778
        %v1919 = vunpack.c.h.b16 %v1778
        %v1920 = vunpack.c.l.b16 %v1779
        %v1921 = vunpack.c.h.b16 %v1779
        %v1922 = vunpack.c.l.b16 %v1780
        %v1923 = vunpack.c.h.b16 %v1780
        %v1924 = vunpack.c.l.b16 %v1781
        %v1925 = vunpack.c.h.b16 %v1781
        %v1926 = vunpack.c.l.b16 %v1782
        %v1927 = vunpack.c.h.b16 %v1782
        %v1928 = vunpack.c.l.b16 %v1783
        %v1929 = vunpack.c.h.b16 %v1783
        %v1930 = vunpack.c.l.b16 %v1784
        %v1931 = vunpack.c.h.b16 %v1784
        %v1932 = vunpack.c.l.b16 %v1785
        %v1933 = vunpack.c.h.b16 %v1785
        %v1934 = vunpack.c.l.b16 %v1786
        %v1935 = vunpack.c.h.b16 %v1786
        %v1936 = vunpack.c.l.b16 %v1787
        %v1937 = vunpack.c.h.b16 %v1787
        %v1938 = vunpack.c.l.b16 %v1788
        %v1939 = vunpack.c.h.b16 %v1788
        %v1940 = vunpack.c.l.b16 %v1789
        %v1941 = vunpack.c.h.b16 %v1789
        %v1942 = vunpack.c.l.b16 %v1790
        %v1943 = vunpack.c.h.b16 %v1790
        %v1944 = vunpack.c.l.b16 %v1791
        %v1945 = vunpack.c.h.b16 %v1791
        %v1946 = vunpack.c.l.b16 %v1792
        %v1947 = vunpack.c.h.b16 %v1792
        %v1948 = vunpack.c.l.b16 %v1793
        %v1949 = vunpack.c.h.b16 %v1793
        %v1950 = vunpack.c.l.b16 %v1794
        %v1951 = vunpack.c.h.b16 %v1794
        %v1952 = vunpack.c.l.b16 %v1795
        %v1953 = vunpack.c.h.b16 %v1795
        %v1954 = vunpack.c.l.b16 %v1796
        %v1955 = vunpack.c.h.b16 %v1796
        %v1956 = vunpack.c.l.b16 %v1797
        %v1957 = vunpack.c.h.b16 %v1797
        %v1958 = vunpack.c.l.b16 %v1798
        %v1959 = vunpack.c.h.b16 %v1798
        %v1960 = vunpack.c.l.b16 %v1799
        %v1961 = vunpack.c.h.b16 %v1799
        %v1962 = vunpack.c.l.b16 %v1800
        %v1963 = vunpack.c.h.b16 %v1800
        %v1964 = vunpack.c.l.b16 %v1801
        %v1965 = vunpack.c.h.b16 %v1801
        %v1966 = vunpack.c.l.b16 %v1802
        %v1967 = vunpack.c.h.b16 %v1802
        %v1968 = vunpack.c.l.b16 %v1803
        %v1969 = vunpack.c.h.b16 %v1803
        %v1970 = vunpack.c.l.b16 %v1804
        %v1971 = vunpack.c.h.b16 %v1804
        %v1972 = vunpack.c.l.b16 %v1805
        %v1973 = vunpack.c.h.b16 %v1805
        %v1974 = vunpack.c.l.b16 %v1806
        %v1975 = vunpack.c.h.b16 %v1806
        %v1976 = vunpack.c.l.b16 %v1807
        %v1977 = vunpack.c.h.b16 %v1807
        %v1978 = vunpack.c.l.b16 %v1808
        %v1979 = vunpack.c.h.b16 %v1808
        %v1980 = vunpack.c.l.b16 %v1809
        %v1981 = vunpack.c.h.b16 %v1809
        %v1982 = vunpack.c.l.b16 %v1810
        %v1983 = vunpack.c.h.b16 %v1810
        %v1984 = vunpack.c.l.b16 %v1811
        %v1985 = vunpack.c.h.b16 %v1811
        %v1986 = vunpack.c.l.b16 %v1812
        %v1987 = vunpack.c.h.b16 %v1812
        %v1988 = vunpack.c.l.b16 %v1813
        %v1989 = vunpack.c.h.b16 %v1813
        %v1990 = vunpack.c.l.b16 %v1814
        %v1991 = vunpack.c.h.b16 %v1814
        %v1992 = vunpack.c.l.b16 %v1815
        %v1993 = vunpack.c.h.b16 %v1815
        %v1994 = vunpack.c.l.b16 %v1816
        %v1995 = vunpack.c.h.b16 %v1816
        %v1996 = vunpack.c.l.b16 %v1817
        %v1997 = vunpack.c.h.b16 %v1817
        %v1998 = vunpack.c.l.b16 %v1818
        %v1999 = vunpack.c.h.b16 %v1818
        %v2000 = vunpack.c.l.b16 %v1819
        %v2001 = vunpack.c.h.b16 %v1819
        %v2002 = vunpack.c.l.b16 %v1820
        %v2003 = vunpack.c.h.b16 %v1820
        %v2004 = vunpack.c.l.b16 %v1821
        %v2005 = vunpack.c.h.b16 %v1821
        %v2006 = vunpack.c.l.b16 %v1822
        %v2007 = vunpack.c.h.b16 %v1822
        %v2008 = vunpack.c.l.b16 %v1823
        %v2009 = vunpack.c.h.b16 %v1823
        %v2010 = vunpack.c.l.b16 %v1824
        %v2011 = vunpack.c.h.b16 %v1824
        %v2012 = vunpack.c.l.b16 %v1825
        %v2013 = vunpack.c.h.b16 %v1825
        %v2014 = vunpack.c.l.b16 %v1826
        %v2015 = vunpack.c.h.b16 %v1826
        %v2016 = vunpack.c.l.b16 %v1827
        %v2017 = vunpack.c.h.b16 %v1827
        %v2018 = vunpack.c.l.b16 %v1828
        %v2019 = vunpack.c.h.b16 %v1828
        %v2020 = vunpack.c.l.b16 %v1829
        %v2021 = vunpack.c.h.b16 %v1829
        %v2022 = vpack.c.b16 %v1896, %v1894
        %v2023 = vpack.c.b16 %v1897, %v1895
        %v2024 = vpack.c.b16 %v1900, %v1898
        %v2025 = vpack.c.b16 %v1901, %v1899
        %v2026 = vpack.c.b16 %v1904, %v1902
        %v2027 = vpack.c.b16 %v1905, %v1903
        %v2028 = vpack.c.b16 %v1908, %v1906
        %v2029 = vpack.c.b16 %v1909, %v1907
        %v2030 = vpack.c.b16 %v1912, %v1910
        %v2031 = vpack.c.b16 %v1913, %v1911
        %v2032 = vpack.c.b16 %v1916, %v1914
        %v2033 = vpack.c.b16 %v1917, %v1915
        %v2034 = vpack.c.b16 %v1920, %v1918
        %v2035 = vpack.c.b16 %v1921, %v1919
        %v2036 = vpack.c.b16 %v1924, %v1922
        %v2037 = vpack.c.b16 %v1925, %v1923
        %v2038 = vpack.c.b16 %v1928, %v1926
        %v2039 = vpack.c.b16 %v1929, %v1927
        %v2040 = vpack.c.b16 %v1932, %v1930
        %v2041 = vpack.c.b16 %v1933, %v1931
        %v2042 = vpack.c.b16 %v1936, %v1934
        %v2043 = vpack.c.b16 %v1937, %v1935
        %v2044 = vpack.c.b16 %v1940, %v1938
        %v2045 = vpack.c.b16 %v1941, %v1939
        %v2046 = vpack.c.b16 %v1944, %v1942
        %v2047 = vpack.c.b16 %v1945, %v1943
        %v2048 = vpack.c.b16 %v1948, %v1946
        %v2049 = vpack.c.b16 %v1949, %v1947
        %v2050 = vpack.c.b16 %v1952, %v1950
        %v2051 = vpack.c.b16 %v1953, %v1951
        %v2052 = vpack.c.b16 %v1956, %v1954
        %v2053 = vpack.c.b16 %v1957, %v1955
        %v2054 = vpack.c.b16 %v1960, %v1958
        %v2055 = vpack.c.b16 %v1961, %v1959
        %v2056 = vpack.c.b16 %v1964, %v1962
        %v2057 = vpack.c.b16 %v1965, %v1963
        %v2058 = vpack.c.b16 %v1968, %v1966
        %v2059 = vpack.c.b16 %v1969, %v1967
        %v2060 = vpack.c.b16 %v1972, %v1970
        %v2061 = vpack.c.b16 %v1973, %v1971
        %v2062 = vpack.c.b16 %v1976, %v1974
        %v2063 = vpack.c.b16 %v1977, %v1975
        %v2064 = vpack.c.b16 %v1980, %v1978
        %v2065 = vpack.c.b16 %v1981, %v1979
        %v2066 = vpack.c.b16 %v1984, %v1982
        %v2067 = vpack.c.b16 %v1985, %v1983
        %v2068 = vpack.c.b16 %v1988, %v1986
        %v2069 = vpack.c.b16 %v1989, %v1987
        %v2070 = vpack.c.b16 %v1992, %v1990
        %v2071 = vpack.c.b16 %v1993, %v1991
        %v2072 = vpack.c.b16 %v1996, %v1994
        %v2073 = vpack.c.b16 %v1997, %v1995
        %v2074 = vpack.c.b16 %v2000, %v1998
        %v2075 = vpack.c.b16 %v2001, %v1999
        %v2076 = vpack.c.b16 %v2004, %v2002
        %v2077 = vpack.c.b16 %v2005, %v2003
        %v2078 = vpack.c.b16 %v2008, %v2006
        %v2079 = vpack.c.b16 %v2009, %v2007
        %v2080 = vpack.c.b16 %v2012, %v2010
        %v2081 = vpack.c.b16 %v2013, %v2011
        %v2082 = vpack.c.b16 %v2016, %v2014
        %v2083 = vpack.c.b16 %v2017, %v2015
        %v2084 = vpack.c.b16 %v2020, %v2018
        %v2085 = vpack.c.b16 %v2021, %v2019
        %2150 = vmatprep.subr.bf16.mxu0 %v2023
        %2151 = vmatpush1.bf16.msra.mxu0 %v2022
        %2152 = vmatprep.subr.bf16.mxu0 %v2025
        %2153 = vmatpush1.bf16.msra.mxu0 %v2024
        %2154 = vmatprep.subr.bf16.mxu0 %v2027
        %2155 = vmatpush1.bf16.msra.mxu0 %v2026
        %2156 = vmatprep.subr.bf16.mxu0 %v2029
        %2157 = vmatpush1.bf16.msra.mxu0 %v2028
        %2158 = vmatprep.subr.bf16.mxu0 %v2031
        %2159 = vmatpush1.bf16.msra.mxu0 %v2030
        %2160 = vmatprep.subr.bf16.mxu0 %v2033
        %2161 = vmatpush1.bf16.msra.mxu0 %v2032
        %2162 = vmatprep.subr.bf16.mxu0 %v2035
        %2163 = vmatpush1.bf16.msra.mxu0 %v2034
        %2164 = vmatprep.subr.bf16.mxu0 %v2037
        %2165 = vmatpush1.bf16.msra.mxu0 %v2036
        %2166 = vmatprep.subr.bf16.mxu0 %v2039
        %2167 = vmatpush1.bf16.msra.mxu0 %v2038
        %2168 = vmatprep.subr.bf16.mxu0 %v2041
        %2169 = vmatpush1.bf16.msra.mxu0 %v2040
        %2170 = vmatprep.subr.bf16.mxu0 %v2043
        %2171 = vmatpush1.bf16.msra.mxu0 %v2042
        %2172 = vmatprep.subr.bf16.mxu0 %v2045
        %2173 = vmatpush1.bf16.msra.mxu0 %v2044
        %2174 = vmatprep.subr.bf16.mxu0 %v2047
        %2175 = vmatpush1.bf16.msra.mxu0 %v2046
        %2176 = vmatprep.subr.bf16.mxu0 %v2049
        %2177 = vmatpush1.bf16.msra.mxu0 %v2048
        %2178 = vmatprep.subr.bf16.mxu0 %v2051
        %2179 = vmatpush1.bf16.msra.mxu0 %v2050
        %2180 = vmatprep.subr.bf16.mxu0 %v2053
        %2181 = vmatpush1.bf16.msra.mxu0 %v2052
        %2182 = vmatprep.mubr.bf16.mxu0 %v1735
        %2183 = vmatmul.mubr.bf16.gmra.mrb[0].mxu0 %v1734
        %v2184 = vpop.f32.mrb[0].mxu0
        %v2185 = vadd.f32 0.0, %v2184
        %v2186 = vpop.f32.mrb[0].mxu0
        %v2187 = vadd.f32 0.0, %v2186
        %v2188 = vpop.f32.mrb[0].mxu0
        %v2189 = vadd.f32 0.0, %v2188
        %v2190 = vpop.f32.mrb[0].mxu0
        %v2191 = vadd.f32 0.0, %v2190
        %2192 = vmatprep.mubr.bf16.mxu0 %v1739
        %2193 = vmatmul.mubr.bf16.gmra.mrb[0].mxu0 %v1738
        %v2194 = vpop.f32.mrb[0].mxu0
        %v2195 = vadd.f32 0.0, %v2194
        %v2196 = vpop.f32.mrb[0].mxu0
        %v2197 = vadd.f32 0.0, %v2196
        %v2198 = vpop.f32.mrb[0].mxu0
        %v2199 = vadd.f32 0.0, %v2198
        %v2200 = vpop.f32.mrb[0].mxu0
        %v2201 = vadd.f32 0.0, %v2200
        %2202 = vmatprep.mubr.bf16.mxu0 %v1743
        %2203 = vmatmul.mubr.bf16.gmra.mrb[0].mxu0 %v1742
        %v2204 = vpop.f32.mrb[0].mxu0
        %v2205 = vadd.f32 0.0, %v2204
        %v2206 = vpop.f32.mrb[0].mxu0
        %v2207 = vadd.f32 0.0, %v2206
        %v2208 = vpop.f32.mrb[0].mxu0
        %v2209 = vadd.f32 0.0, %v2208
        %v2210 = vpop.f32.mrb[0].mxu0
        %v2211 = vadd.f32 0.0, %v2210
        %2212 = vmatprep.mubr.bf16.mxu0 %v1747
        %2213 = vmatmul.mubr.bf16.gmra.mrb[0].mxu0 %v1746
        %v2214 = vpop.f32.mrb[0].mxu0
        %v2215 = vadd.f32 0.0, %v2214
        %v2216 = vpop.f32.mrb[0].mxu0
        %v2217 = vadd.f32 0.0, %v2216
        %v2218 = vpop.f32.mrb[0].mxu0
        %v2219 = vadd.f32 0.0, %v2218
        %v2220 = vpop.f32.mrb[0].mxu0
        %v2221 = vadd.f32 0.0, %v2220
        %2222 = vmatprep.mubr.bf16.mxu0 %v1751
        %2223 = vmatmul.mubr.bf16.gmra.mrb[0].mxu0 %v1750
        %v2224 = vpop.f32.mrb[0].mxu0
        %v2225 = vadd.f32 0.0, %v2224
        %v2226 = vpop.f32.mrb[0].mxu0
        %v2227 = vadd.f32 0.0, %v2226
        %v2228 = vpop.f32.mrb[0].mxu0
        %v2229 = vadd.f32 0.0, %v2228
        %v2230 = vpop.f32.mrb[0].mxu0
        %v2231 = vadd.f32 0.0, %v2230
        %2232 = vmatprep.mubr.bf16.mxu0 %v1755
        %2233 = vmatmul.mubr.bf16.gmra.mrb[0].mxu0 %v1754
        %v2234 = vpop.f32.mrb[0].mxu0
        %v2235 = vadd.f32 0.0, %v2234
        %v2236 = vpop.f32.mrb[0].mxu0
        %v2237 = vadd.f32 0.0, %v2236
        %v2238 = vpop.f32.mrb[0].mxu0
        %v2239 = vadd.f32 0.0, %v2238
        %v2240 = vpop.f32.mrb[0].mxu0
        %v2241 = vadd.f32 0.0, %v2240
        %2242 = vmatprep.mubr.bf16.mxu0 %v1759
        %2243 = vmatmul.mubr.bf16.gmra.mrb[0].mxu0 %v1758
        %v2244 = vpop.f32.mrb[0].mxu0
        %v2245 = vadd.f32 0.0, %v2244
        %v2246 = vpop.f32.mrb[0].mxu0
        %v2247 = vadd.f32 0.0, %v2246
        %v2248 = vpop.f32.mrb[0].mxu0
        %v2249 = vadd.f32 0.0, %v2248
        %v2250 = vpop.f32.mrb[0].mxu0
        %v2251 = vadd.f32 0.0, %v2250
        %2252 = vmatprep.mubr.bf16.mxu0 %v1763
        %2253 = vmatmul.mubr.bf16.gmra.mrb[0].mxu0 %v1762
        %v2254 = vpop.f32.mrb[0].mxu0
        %v2255 = vadd.f32 0.0, %v2254
        %v2256 = vpop.f32.mrb[0].mxu0
        %v2257 = vadd.f32 0.0, %v2256
        %v2258 = vpop.f32.mrb[0].mxu0
        %v2259 = vadd.f32 0.0, %v2258
        %v2260 = vpop.f32.mrb[0].mxu0
        %v2261 = vadd.f32 0.0, %v2260
        %2262 = vdwg.mxu0
        %2263 = vmatprep.subr.bf16.mxu0 %v2055
        %2264 = vmatpush1.bf16.msra.mxu0 %v2054
        %2265 = vmatprep.subr.bf16.mxu0 %v2057
        %2266 = vmatpush1.bf16.msra.mxu0 %v2056
        %2267 = vmatprep.subr.bf16.mxu0 %v2059
        %2268 = vmatpush1.bf16.msra.mxu0 %v2058
        %2269 = vmatprep.subr.bf16.mxu0 %v2061
        %2270 = vmatpush1.bf16.msra.mxu0 %v2060
        %2271 = vmatprep.subr.bf16.mxu0 %v2063
        %2272 = vmatpush1.bf16.msra.mxu0 %v2062
        %2273 = vmatprep.subr.bf16.mxu0 %v2065
        %2274 = vmatpush1.bf16.msra.mxu0 %v2064
        %2275 = vmatprep.subr.bf16.mxu0 %v2067
        %2276 = vmatpush1.bf16.msra.mxu0 %v2066
        %2277 = vmatprep.subr.bf16.mxu0 %v2069
        %2278 = vmatpush1.bf16.msra.mxu0 %v2068
        %2279 = vmatprep.subr.bf16.mxu0 %v2071
        %2280 = vmatpush1.bf16.msra.mxu0 %v2070
        %2281 = vmatprep.subr.bf16.mxu0 %v2073
        %2282 = vmatpush1.bf16.msra.mxu0 %v2072
        %2283 = vmatprep.subr.bf16.mxu0 %v2075
        %2284 = vmatpush1.bf16.msra.mxu0 %v2074
        %2285 = vmatprep.subr.bf16.mxu0 %v2077
        %2286 = vmatpush1.bf16.msra.mxu0 %v2076
        %2287 = vmatprep.subr.bf16.mxu0 %v2079
        %2288 = vmatpush1.bf16.msra.mxu0 %v2078
        %2289 = vmatprep.subr.bf16.mxu0 %v2081
        %2290 = vmatpush1.bf16.msra.mxu0 %v2080
        %2291 = vmatprep.subr.bf16.mxu0 %v2083
        %2292 = vmatpush1.bf16.msra.mxu0 %v2082
        %2293 = vmatprep.subr.bf16.mxu0 %v2085
        %2294 = vmatpush1.bf16.msra.mxu0 %v2084
        %2295 = vmatprep.mubr.bf16.mxu0 %v1737
        %2296 = vmatmul.mubr.bf16.gmra.mrb[0].mxu0 %v1736
        %v2297 = vpop.f32.mrb[0].mxu0
        %v2298 = vadd.f32 %v2185, %v2297
        %v2299 = vpop.f32.mrb[0].mxu0
        %v2300 = vadd.f32 %v2187, %v2299
        %v2301 = vpop.f32.mrb[0].mxu0
        %v2302 = vadd.f32 %v2189, %v2301
        %v2303 = vpop.f32.mrb[0].mxu0
        %v2304 = vadd.f32 %v2191, %v2303
        %2305 = vmatprep.mubr.bf16.mxu0 %v1741
        %2306 = vmatmul.mubr.bf16.gmra.mrb[0].mxu0 %v1740
        %v2307 = vpop.f32.mrb[0].mxu0
        %v2308 = vadd.f32 %v2195, %v2307
        %v2309 = vpop.f32.mrb[0].mxu0
        %v2310 = vadd.f32 %v2197, %v2309
        %v2311 = vpop.f32.mrb[0].mxu0
        %v2312 = vadd.f32 %v2199, %v2311
        %v2313 = vpop.f32.mrb[0].mxu0
        %v2314 = vadd.f32 %v2201, %v2313
        %2315 = vmatprep.mubr.bf16.mxu0 %v1745
        %2316 = vmatmul.mubr.bf16.gmra.mrb[0].mxu0 %v1744
        %v2317 = vpop.f32.mrb[0].mxu0
        %v2318 = vadd.f32 %v2205, %v2317
        %v2319 = vpop.f32.mrb[0].mxu0
        %v2320 = vadd.f32 %v2207, %v2319
        %v2321 = vpop.f32.mrb[0].mxu0
        %v2322 = vadd.f32 %v2209, %v2321
        %v2323 = vpop.f32.mrb[0].mxu0
        %v2324 = vadd.f32 %v2211, %v2323
        %2325 = vmatprep.mubr.bf16.mxu0 %v1749
        %2326 = vmatmul.mubr.bf16.gmra.mrb[0].mxu0 %v1748
        %v2327 = vpop.f32.mrb[0].mxu0
        %v2328 = vadd.f32 %v2215, %v2327
        %v2329 = vpop.f32.mrb[0].mxu0
        %v2330 = vadd.f32 %v2217, %v2329
        %v2331 = vpop.f32.mrb[0].mxu0
        %v2332 = vadd.f32 %v2219, %v2331
        %v2333 = vpop.f32.mrb[0].mxu0
        %v2334 = vadd.f32 %v2221, %v2333
        %2335 = vmatprep.mubr.bf16.mxu0 %v1753
        %2336 = vmatmul.mubr.bf16.gmra.mrb[0].mxu0 %v1752
        %v2337 = vpop.f32.mrb[0].mxu0
        %v2338 = vadd.f32 %v2225, %v2337
        %v2339 = vpop.f32.mrb[0].mxu0
        %v2340 = vadd.f32 %v2227, %v2339
        %v2341 = vpop.f32.mrb[0].mxu0
        %v2342 = vadd.f32 %v2229, %v2341
        %v2343 = vpop.f32.mrb[0].mxu0
        %v2344 = vadd.f32 %v2231, %v2343
        %2345 = vmatprep.mubr.bf16.mxu0 %v1757
        %2346 = vmatmul.mubr.bf16.gmra.mrb[0].mxu0 %v1756
        %v2347 = vpop.f32.mrb[0].mxu0
        %v2348 = vadd.f32 %v2235, %v2347
        %v2349 = vpop.f32.mrb[0].mxu0
        %v2350 = vadd.f32 %v2237, %v2349
        %v2351 = vpop.f32.mrb[0].mxu0
        %v2352 = vadd.f32 %v2239, %v2351
        %v2353 = vpop.f32.mrb[0].mxu0
        %v2354 = vadd.f32 %v2241, %v2353
        %2355 = vmatprep.mubr.bf16.mxu0 %v1761
        %2356 = vmatmul.mubr.bf16.gmra.mrb[0].mxu0 %v1760
        %v2357 = vpop.f32.mrb[0].mxu0
        %v2358 = vadd.f32 %v2245, %v2357
        %v2359 = vpop.f32.mrb[0].mxu0
        %v2360 = vadd.f32 %v2247, %v2359
        %v2361 = vpop.f32.mrb[0].mxu0
        %v2362 = vadd.f32 %v2249, %v2361
        %v2363 = vpop.f32.mrb[0].mxu0
        %v2364 = vadd.f32 %v2251, %v2363
        %2365 = vmatprep.mubr.bf16.mxu0 %v1765
        %2366 = vmatmul.mubr.bf16.gmra.mrb[0].mxu0 %v1764
        %v2367 = vpop.f32.mrb[0].mxu0
        %v2368 = vadd.f32 %v2255, %v2367
        %v2369 = vpop.f32.mrb[0].mxu0
        %v2370 = vadd.f32 %v2257, %v2369
        %v2371 = vpop.f32.mrb[0].mxu0
        %v2372 = vadd.f32 %v2259, %v2371
        %v2373 = vpop.f32.mrb[0].mxu0
        %v2374 = vadd.f32 %v2261, %v2373
        %2375 = vdwg.mxu0
        %v2376 = vadd.f32 %v1702, %v2298
        %v2377 = vadd.f32 %v1703, %v2300
        %v2378 = vadd.f32 %v1704, %v2302
        %v2379 = vadd.f32 %v1705, %v2304
        %v2380 = vadd.f32 %v1706, %v2308
        %v2381 = vadd.f32 %v1707, %v2310
        %v2382 = vadd.f32 %v1708, %v2312
        %v2383 = vadd.f32 %v1709, %v2314
        %v2384 = vadd.f32 %v1710, %v2318
        %v2385 = vadd.f32 %v1711, %v2320
        %v2386 = vadd.f32 %v1712, %v2322
        %v2387 = vadd.f32 %v1713, %v2324
        %v2388 = vadd.f32 %v1714, %v2328
        %v2389 = vadd.f32 %v1715, %v2330
        %v2390 = vadd.f32 %v1716, %v2332
        %v2391 = vadd.f32 %v1717, %v2334
        %v2392 = vadd.f32 %v1718, %v2338
        %v2393 = vadd.f32 %v1719, %v2340
        %v2394 = vadd.f32 %v1720, %v2342
        %v2395 = vadd.f32 %v1721, %v2344
        %v2396 = vadd.f32 %v1722, %v2348
        %v2397 = vadd.f32 %v1723, %v2350
        %v2398 = vadd.f32 %v1724, %v2352
        %v2399 = vadd.f32 %v1725, %v2354
        %v2400 = vadd.f32 %v1726, %v2358
        %v2401 = vadd.f32 %v1727, %v2360
        %v2402 = vadd.f32 %v1728, %v2362
        %v2403 = vadd.f32 %v1729, %v2364
        %v2404 = vadd.f32 %v1730, %v2368
        %v2405 = vadd.f32 %v1731, %v2370
        %v2406 = vadd.f32 %v1732, %v2372
        %v2407 = vadd.f32 %v1733, %v2374
        %2408 = vst [vmem:[%s349] sm:$0xff] %v2376
        %2409 = vst [vmem:[%s349 + $0x8] sm:$0xff] %v2377
        %2410 = vst [vmem:[%s349 + $0x10] sm:$0xff] %v2378
        %2411 = vst [vmem:[%s349 + $0x18] sm:$0xff] %v2379
        %2412 = vst [vmem:[%s349 + $0x20] sm:$0xff] %v2380
        %2413 = vst [vmem:[%s349 + $0x28] sm:$0xff] %v2381
        %2414 = vst [vmem:[%s349 + $0x30] sm:$0xff] %v2382
        %2415 = vst [vmem:[%s349 + $0x38] sm:$0xff] %v2383
        %2416 = vst [vmem:[%s349 + $0x40] sm:$0xff] %v2384
        %2417 = vst [vmem:[%s349 + $0x48] sm:$0xff] %v2385
        %2418 = vst [vmem:[%s349 + $0x50] sm:$0xff] %v2386
        %2419 = vst [vmem:[%s349 + $0x58] sm:$0xff] %v2387
        %2420 = vst [vmem:[%s349 + $0x60] sm:$0xff] %v2388
        %2421 = vst [vmem:[%s349 + $0x68] sm:$0xff] %v2389
        %2422 = vst [vmem:[%s349 + $0x70] sm:$0xff] %v2390
        %2423 = vst [vmem:[%s349 + $0x78] sm:$0xff] %v2391
        %2424 = vst [vmem:[%s349 + $0x80] sm:$0xff] %v2392
        %2425 = vst [vmem:[%s349 + $0x88] sm:$0xff] %v2393
        %2426 = vst [vmem:[%s349 + $0x90] sm:$0xff] %v2394
        %2427 = vst [vmem:[%s349 + $0x98] sm:$0xff] %v2395
        %2428 = vst [vmem:[%s349 + $0xa0] sm:$0xff] %v2396
        %2429 = vst [vmem:[%s349 + $0xa8] sm:$0xff] %v2397
        %2430 = vst [vmem:[%s349 + $0xb0] sm:$0xff] %v2398
        %2431 = vst [vmem:[%s349 + $0xb8] sm:$0xff] %v2399
        %2432 = vst [vmem:[%s349 + $0xc0] sm:$0xff] %v2400
        %2433 = vst [vmem:[%s349 + $0xc8] sm:$0xff] %v2401
        %2434 = vst [vmem:[%s349 + $0xd0] sm:$0xff] %v2402
        %2435 = vst [vmem:[%s349 + $0xd8] sm:$0xff] %v2403
        %2436 = vst [vmem:[%s349 + $0xe0] sm:$0xff] %v2404
        %2437 = vst [vmem:[%s349 + $0xe8] sm:$0xff] %v2405
        %2438 = vst [vmem:[%s349 + $0xf0] sm:$0xff] %v2406
        %2439 = vst [vmem:[%s349 + $0xf8] sm:$0xff] %v2407
        %p2440 = scmp.eq.s32.totalorder %s33, 1
        // Predicated region
        $region61: #{tpu_custom_call.1} parent=39 // pred_check
          %p2441 = pneg %p2440
        $region62: #{tpu_custom_call.1} parent=39 // pred_check_branch
          %2443 = sbr.rel (%p2441) target = $region64
        $region63: #{tpu_custom_call.1} parent=39 // pred_region
          %v2444 = vld [vmem:[%s349] sm:$0xff]
          %v2445 = vld [vmem:[%s349 + $0x8] sm:$0xff]
          %v2446 = vld [vmem:[%s349 + $0x10] sm:$0xff]
          %v2447 = vld [vmem:[%s349 + $0x18] sm:$0xff]
          %v2448 = vld [vmem:[%s349 + $0x20] sm:$0xff]
          %v2449 = vld [vmem:[%s349 + $0x28] sm:$0xff]
          %v2450 = vld [vmem:[%s349 + $0x30] sm:$0xff]
          %v2451 = vld [vmem:[%s349 + $0x38] sm:$0xff]
          %v2452 = vld [vmem:[%s349 + $0x40] sm:$0xff]
          %v2453 = vld [vmem:[%s349 + $0x48] sm:$0xff]
          %v2454 = vld [vmem:[%s349 + $0x50] sm:$0xff]
          %v2455 = vld [vmem:[%s349 + $0x58] sm:$0xff]
          %v2456 = vld [vmem:[%s349 + $0x60] sm:$0xff]
          %v2457 = vld [vmem:[%s349 + $0x68] sm:$0xff]
          %v2458 = vld [vmem:[%s349 + $0x70] sm:$0xff]
          %v2459 = vld [vmem:[%s349 + $0x78] sm:$0xff]
          %v2460 = vld [vmem:[%s349 + $0x80] sm:$0xff]
          %v2461 = vld [vmem:[%s349 + $0x88] sm:$0xff]
          %v2462 = vld [vmem:[%s349 + $0x90] sm:$0xff]
          %v2463 = vld [vmem:[%s349 + $0x98] sm:$0xff]
          %v2464 = vld [vmem:[%s349 + $0xa0] sm:$0xff]
          %v2465 = vld [vmem:[%s349 + $0xa8] sm:$0xff]
          %v2466 = vld [vmem:[%s349 + $0xb0] sm:$0xff]
          %v2467 = vld [vmem:[%s349 + $0xb8] sm:$0xff]
          %v2468 = vld [vmem:[%s349 + $0xc0] sm:$0xff]
          %v2469 = vld [vmem:[%s349 + $0xc8] sm:$0xff]
          %v2470 = vld [vmem:[%s349 + $0xd0] sm:$0xff]
          %v2471 = vld [vmem:[%s349 + $0xd8] sm:$0xff]
          %v2472 = vld [vmem:[%s349 + $0xe0] sm:$0xff]
          %v2473 = vld [vmem:[%s349 + $0xe8] sm:$0xff]
          %v2474 = vld [vmem:[%s349 + $0xf0] sm:$0xff]
          %v2475 = vld [vmem:[%s349 + $0xf8] sm:$0xff]
          %v2476 = vld [vmem:[%s4] sm:$0x3]
          %v2478 = vlaneseq
          %v2479 = vshrl.u32 %v2478, 7
          %v2480 = vsub.s32 0, %v2479
          %v2481 = vrot.slane %v2476, %v2480
          %v2482 = vlaneseq
          %v2483 = vshrl.u32 %v2482, 7
          %v2484 = vsub.s32 1, %v2483
          %v2485 = vrot.slane %v2476, %v2484
          %v2488 = vadd.f32 %v2444, %v2481
          %v2489 = vadd.f32 %v2445, %v2485
          %v2490 = vadd.f32 %v2446, %v2481
          %v2491 = vadd.f32 %v2447, %v2485
          %v2492 = vadd.f32 %v2448, %v2481
          %v2493 = vadd.f32 %v2449, %v2485
          %v2494 = vadd.f32 %v2450, %v2481
          %v2495 = vadd.f32 %v2451, %v2485
          %v2496 = vadd.f32 %v2452, %v2481
          %v2497 = vadd.f32 %v2453, %v2485
          %v2498 = vadd.f32 %v2454, %v2481
          %v2499 = vadd.f32 %v2455, %v2485
          %v2500 = vadd.f32 %v2456, %v2481
          %v2501 = vadd.f32 %v2457, %v2485
          %v2502 = vadd.f32 %v2458, %v2481
          %v2503 = vadd.f32 %v2459, %v2485
          %v2504 = vadd.f32 %v2460, %v2481
          %v2505 = vadd.f32 %v2461, %v2485
          %v2506 = vadd.f32 %v2462, %v2481
          %v2507 = vadd.f32 %v2463, %v2485
          %v2508 = vadd.f32 %v2464, %v2481
          %v2509 = vadd.f32 %v2465, %v2485
          %v2510 = vadd.f32 %v2466, %v2481
          %v2511 = vadd.f32 %v2467, %v2485
          %v2512 = vadd.f32 %v2468, %v2481
          %v2513 = vadd.f32 %v2469, %v2485
          %v2514 = vadd.f32 %v2470, %v2481
          %v2515 = vadd.f32 %v2471, %v2485
          %v2516 = vadd.f32 %v2472, %v2481
          %v2517 = vadd.f32 %v2473, %v2485
          %v2518 = vadd.f32 %v2474, %v2481
          %v2519 = vadd.f32 %v2475, %v2485
          %2520 = vst [vmem:[%s349] sm:$0xff] %v2488
          %2521 = vst [vmem:[%s349 + $0x8] sm:$0xff] %v2489
          %2522 = vst [vmem:[%s349 + $0x10] sm:$0xff] %v2490
          %2523 = vst [vmem:[%s349 + $0x18] sm:$0xff] %v2491
          %2524 = vst [vmem:[%s349 + $0x20] sm:$0xff] %v2492
          %2525 = vst [vmem:[%s349 + $0x28] sm:$0xff] %v2493
          %2526 = vst [vmem:[%s349 + $0x30] sm:$0xff] %v2494
          %2527 = vst [vmem:[%s349 + $0x38] sm:$0xff] %v2495
          %2528 = vst [vmem:[%s349 + $0x40] sm:$0xff] %v2496
          %2529 = vst [vmem:[%s349 + $0x48] sm:$0xff] %v2497
          %2530 = vst [vmem:[%s349 + $0x50] sm:$0xff] %v2498
          %2531 = vst [vmem:[%s349 + $0x58] sm:$0xff] %v2499
          %2532 = vst [vmem:[%s349 + $0x60] sm:$0xff] %v2500
          %2533 = vst [vmem:[%s349 + $0x68] sm:$0xff] %v2501
          %2534 = vst [vmem:[%s349 + $0x70] sm:$0xff] %v2502
          %2535 = vst [vmem:[%s349 + $0x78] sm:$0xff] %v2503
          %2536 = vst [vmem:[%s349 + $0x80] sm:$0xff] %v2504
          %2537 = vst [vmem:[%s349 + $0x88] sm:$0xff] %v2505
          %2538 = vst [vmem:[%s349 + $0x90] sm:$0xff] %v2506
          %2539 = vst [vmem:[%s349 + $0x98] sm:$0xff] %v2507
          %2540 = vst [vmem:[%s349 + $0xa0] sm:$0xff] %v2508
          %2541 = vst [vmem:[%s349 + $0xa8] sm:$0xff] %v2509
          %2542 = vst [vmem:[%s349 + $0xb0] sm:$0xff] %v2510
          %2543 = vst [vmem:[%s349 + $0xb8] sm:$0xff] %v2511
          %2544 = vst [vmem:[%s349 + $0xc0] sm:$0xff] %v2512
          %2545 = vst [vmem:[%s349 + $0xc8] sm:$0xff] %v2513
          %2546 = vst [vmem:[%s349 + $0xd0] sm:$0xff] %v2514
          %2547 = vst [vmem:[%s349 + $0xd8] sm:$0xff] %v2515
          %2548 = vst [vmem:[%s349 + $0xe0] sm:$0xff] %v2516
          %2549 = vst [vmem:[%s349 + $0xe8] sm:$0xff] %v2517
          %2550 = vst [vmem:[%s349 + $0xf0] sm:$0xff] %v2518
          %2551 = vst [vmem:[%s349 + $0xf8] sm:$0xff] %v2519
        $region64: #{tpu_custom_call.1} parent=39 // pred_fallthru
          _
        %s2552 = sand.u32 %s168, 1
        %s2553 = scalar_lea.sflag [#allocation4], %s2552
        %s2554 = sand.u32 %s168, 1
        %s2555 = smul.addr %s2554, 256
        %s2556 = scalar_lea.vmem [#allocation10], %s2555
        // Predicated region
        $region65: #{tpu_custom_call.1} parent=39 // pred_check
          %p2557 = pneg %p178
        $region66: #{tpu_custom_call.1} parent=39 // pred_check_branch
          %2559 = sbr.rel (%p2557) target = $region68
        $region67: #{tpu_custom_call.1} parent=39 // pred_region
          %s2560 = smul.u32 16, %s32
          %s2562 = ssub.s32 4096, 4096
          %2563 = vsyncadd %s2553, %s2562
          %s2564 = smul.addr %s2560, 2
          %s2565 = smul.addr %s2564, 128
          %s2566 = scalar_lea.hbm %s5, %s2565
          %s2567 = sshll.u32 %s2556, 4
          %s2568 = int_to_ptr.vmem [resolvable:$true] %s2567
          %2573 = dma.vmem_to_hbm [thread:$0]  %s2568, 4096, %s2566, %s2553, 256, 256, 16
        $region68: #{tpu_custom_call.1} parent=39 // pred_fallthru
          _
      $region40: #{tpu_custom_call.1} parent=5 // pred_fallthru
        _
      %p2574 = scmp.le.s32.totalorder 2, %s23
      // Predicated region
      $region69: #{tpu_custom_call.1} parent=5 // pred_check
        %p2575 = pneg %p2574
      $region70: #{tpu_custom_call.1} parent=5 // pred_check_branch
        %2577 = sbr.rel (%p2575) target = $region72
      $region71: #{tpu_custom_call.1} parent=5 // pred_region
        %s2578 = ssub.s32 %s23, 2
        // Predicated region
        $region73: #{tpu_custom_call.1} parent=71 // pred_check
          %p2579 = pneg %p184
        $region74: #{tpu_custom_call.1} parent=71 // pred_check_branch
          %2581 = sbr.rel (%p2579) target = $region76
        $region75: #{tpu_custom_call.1} parent=71 // pred_region
          %s2582 = sand.u32 %s169, 1
          %s2583 = scalar_lea.sflag [#allocation4], %s2582
          %s2584 = sand.u32 %s169, 1
          %s2585 = smul.addr %s2584, 256
          %s2586 = scalar_lea.vmem [#allocation10], %s2585
          %2587 = dma.done %s2583, 4096
        $region76: #{tpu_custom_call.1} parent=71 // pred_fallthru
          _
      $region72: #{tpu_custom_call.1} parent=5 // pred_fallthru
        _
    $region6: #{tpu_custom_call.1} parent=1 // loop_footer
      %s27 = sadd.s32 1, %s23
    $region7: #{tpu_custom_call.1} parent=1 // loop_footer_branch
      %22 = sbr.rel target = $region3
    $region8: #{tpu_custom_call.1} parent=1 // loop_exit
      _
    %2588 = vsyncpa [#allocation3], 1
    %s2589 = scalar_lea.sflag [#allocation3], 1
    %2590 = vsyncpa %s2589, 1
    %2591 = vsyncpa [#allocation6], 1
    %s2592 = scalar_lea.sflag [#allocation6], 1
    %2593 = vsyncpa %s2592, 1
    %2594 = vsyncpa [#allocation9], 1
    %s2595 = scalar_lea.sflag [#allocation9], 1
    %2596 = vsyncpa %s2595, 1
    %2597 = vsyncpa [#allocation4], 1
    %s2598 = scalar_lea.sflag [#allocation4], 1
    %2599 = vsyncpa %s2598, 1

</llo_original>
